<compile_context>
chip_gen: v5e
topology: v5e:2x2
jax: 0.10.0
libtpu: 0.0.40
codegen_flags: <defaults>
</compile_context>

<pallas_src>
import numpy as np
import jax
import jax.numpy as jnp
from jax import lax
from jax.experimental import pallas as pl
from jax.experimental.pallas import tpu as pltpu

EPS = 1e-5      # BatchNorm eps
GN_EPS = 1e-5   # GroupNorm eps


# --------------------------------------------------------------------------
# Fused BasicBlock kernel (one batch element per grid step, channels-last)
# --------------------------------------------------------------------------
def _basic_block_kernel(x_ref, dw_ref, bdw_ref, mask_ref, gng_ref, gnb_ref,
                        wq_ref, bq_ref, wk_ref, bk_ref, wv_ref, bv_ref,
                        wpa_ref, wpb_ref, bp_ref,
                        w1_ref, b1_ref, w2_ref, b2_ref,
                        o_ref, pad_ref):
    H, W, C = x_ref.shape
    N = H * W
    pdim = wv_ref.shape[1]
    qk = wq_ref.shape[1]

    x = x_ref[...].astype(jnp.float32)                       # (H, W, C)

    # ---- stage 1: residual depthwise 3x3 conv (BN folded) -------------------
    # Zero-padded map lives in VMEM scratch; 9 shifted taps are read from it.
    pad_ref[...] = jnp.zeros(pad_ref.shape, jnp.float32)
    pad_ref[1:H + 1, 1:W + 1, :] = x

    dwk = dw_ref[...]                                         # (9, C), loaded once
    acc = jnp.zeros((N, C), jnp.float32)
    idx = 0
    for kh in range(3):
        for kw in range(3):
            tap = pad_ref[kh:kh + H, kw:kw + W, :].reshape(N, C)
            acc = acc + tap * dwk[idx:idx + 1, :]
            idx += 1
    xc = x.reshape(N, C) + acc + bdw_ref[...]                 # (N, C)

    # ---- stage 2: residual SHSA mixer ---------------------------------------
    # GroupNorm(1 group) over the first pdim channels via a channel mask.
    m = mask_ref[...]                                         # (1, C)
    denom = float(N * pdim)
    mu = jnp.sum(xc * m) / denom
    var = jnp.sum(((xc - mu) ** 2) * m) / denom
    # gamma/beta are zero-padded beyond pdim -> x1n is exactly 0 there, so the
    # (zero-padded) qkv weights see only the pdim-channel GroupNorm output.
    x1n = (xc - mu) * lax.rsqrt(var + GN_EPS) * gng_ref[...] + gnb_ref[...]

    q = jnp.dot(x1n, wq_ref[...], preferred_element_type=jnp.float32) + bq_ref[...]
    k = jnp.dot(x1n, wk_ref[...], preferred_element_type=jnp.float32) + bk_ref[...]
    v = jnp.dot(x1n, wv_ref[...], preferred_element_type=jnp.float32) + bv_ref[...]

    attn = lax.dot_general(q, k, (((1,), (1,)), ((), ())),
                           preferred_element_type=jnp.float32) * (qk ** -0.5)
    amax = jnp.max(attn, axis=-1, keepdims=True)
    aexp = jnp.exp(attn - amax)
    attn = aexp / jnp.sum(aexp, axis=-1, keepdims=True)
    x1o = jnp.dot(attn, v, preferred_element_type=jnp.float32)    # (N, pdim)

    # proj = ReLU(concat(x1o, x2)) @ Wproj  split as two matmuls:
    #   rows < pdim of wpb are zeroed, so relu(xc) only contributes x2 channels.
    proj = (jnp.dot(jnp.maximum(x1o, 0.0), wpa_ref[...],
                    preferred_element_type=jnp.float32)
            + jnp.dot(jnp.maximum(xc, 0.0), wpb_ref[...],
                      preferred_element_type=jnp.float32)
            + bp_ref[...])
    xm = xc + proj                                             # (N, C)

    # ---- stage 3: residual FFN ----------------------------------------------
    h = jnp.maximum(jnp.dot(xm, w1_ref[...],
                            preferred_element_type=jnp.float32) + b1_ref[...], 0.0)
    ffn = jnp.dot(h, w2_ref[...], preferred_element_type=jnp.float32) + b2_ref[...]

    o_ref[...] = (xm + ffn).reshape(H, W, C).astype(o_ref.dtype)


# --------------------------------------------------------------------------
# Wrapper: NCHW in/out (PyTorch interface), channels-last inside
# --------------------------------------------------------------------------
def _const_spec(arr):
    zeros = (0,) * arr.ndim
    return pl.BlockSpec(arr.shape, lambda b: zeros)


def basic_block_pallas(x_nchw, p):
    B, C, H, W = x_nchw.shape
    x = jnp.transpose(x_nchw, (0, 2, 3, 1))   # NCHW -> NHWC (channels on lanes)

    weight_names = ['dw_eff', 'b_dw', 'ch_mask', 'gn_g', 'gn_b',
                    'wq', 'bq', 'wk', 'bk', 'wv', 'bv',
                    'wp_a', 'wp_b', 'bproj', 'w1', 'b1', 'w2', 'b2']
    weights = [p[n] for n in weight_names]

    in_specs = [pl.BlockSpec((None, H, W, C), lambda b: (b, 0, 0, 0))]
    in_specs += [_const_spec(w) for w in weights]

    out = pl.pallas_call(
        _basic_block_kernel,
        out_shape=jax.ShapeDtypeStruct((B, H, W, C), jnp.float32),
        grid=(B,),
        in_specs=in_specs,
        out_specs=pl.BlockSpec((None, H, W, C), lambda b: (b, 0, 0, 0)),
        scratch_shapes=[pltpu.VMEM((H + 2, W + 2, C), jnp.float32)],
        compiler_params=pltpu.CompilerParams(
            dimension_semantics=("parallel",)),
    )(x, *weights)

    return jnp.transpose(out, (0, 3, 1, 2))    # NHWC -> NCHW


# --------------------------------------------------------------------------
# Deterministic parameter init + BN folding (channels-last, zero-padded)
# --------------------------------------------------------------------------
def init_raw_params(key, dim, qk_dim, pdim):
    ks = jax.random.split(key, 12)

    def bn_init(k, n):
        k1, k2, k3, k4 = jax.random.split(k, 4)
        return dict(
            gamma=jax.random.uniform(k1, (n,), jnp.float32, 0.5, 1.5),
            beta=0.1 * jax.random.normal(k2, (n,), jnp.float32),
            mean=0.1 * jax.random.normal(k3, (n,), jnp.float32),
            var=jax.random.uniform(k4, (n,), jnp.float32, 0.5, 1.5),
        )

    h = 2 * dim
    return dict(
        dw_w=jax.random.normal(ks[0], (dim, 3, 3), jnp.float32) / 3.0,
        bn_dw=bn_init(ks[1], dim),
        gn_g=jax.random.uniform(ks[2], (pdim,), jnp.float32, 0.5, 1.5),
        gn_b=0.1 * jax.random.normal(ks[3], (pdim,), jnp.float32),
        qkv_w=jax.random.normal(ks[4], (2 * qk_dim + pdim, pdim), jnp.float32) / np.sqrt(pdim),
        bn_qkv=bn_init(ks[5], 2 * qk_dim + pdim),
        proj_w=jax.random.normal(ks[6], (dim, dim), jnp.float32) / np.sqrt(dim),
        bn_proj=bn_init(ks[7], dim),
        pw1_w=jax.random.normal(ks[8], (h, dim), jnp.float32) / np.sqrt(dim),
        bn_pw1=bn_init(ks[9], h),
        pw2_w=jax.random.normal(ks[10], (dim, h), jnp.float32) / np.sqrt(h),
        bn_pw2=bn_init(ks[11], dim),
    )


def fold_params(raw, dim, qk_dim, pdim):
    def scale_bias(bn):
        s = bn['gamma'] / jnp.sqrt(bn['var'] + EPS)
        return s, bn['beta'] - bn['mean'] * s

    s_dw, b_dw = scale_bias(raw['bn_dw'])
    s_qkv, b_qkv = scale_bias(raw['bn_qkv'])
    s_pr, b_pr = scale_bias(raw['bn_proj'])
    s_p1, b_p1 = scale_bias(raw['bn_pw1'])
    s_p2, b_p2 = scale_bias(raw['bn_pw2'])

    # depthwise (C,3,3) -> (9, C), BN scale folded; row index = kh*3 + kw
    dw_eff = jnp.transpose(raw['dw_w'], (1, 2, 0)).reshape(9, dim) * s_dw[None, :]

    # qkv 1x1 conv (out, in) -> channels-last (in, out), BN folded, then split
    # into q/k/v and zero-padded on the contraction dim pdim -> dim so the
    # kernel can matmul the full lane-dense (N, C) activation.
    wqkv = (raw['qkv_w'] * s_qkv[:, None]).T                   # (pdim, 2qk+pdim)
    wq = wqkv[:, :qk_dim]
    wk = wqkv[:, qk_dim:2 * qk_dim]
    wv = wqkv[:, 2 * qk_dim:]
    bq = b_qkv[:qk_dim]
    bk = b_qkv[qk_dim:2 * qk_dim]
    bv = b_qkv[2 * qk_dim:]
    cpad = ((0, dim - pdim), (0, 0))
    wq_p, wk_p, wv_p = (jnp.pad(wq, cpad), jnp.pad(wk, cpad), jnp.pad(wv, cpad))

    # GroupNorm affine padded to full channel width (zeros beyond pdim)
    gn_g_p = jnp.pad(raw['gn_g'], (0, dim - pdim))
    gn_b_p = jnp.pad(raw['gn_b'], (0, dim - pdim))
    ch_mask = (jnp.arange(dim) < pdim).astype(jnp.float32)

    # proj 1x1 conv: split into the part applied to the attention output
    # (first pdim input channels) and the pass-through part (rows < pdim zeroed)
    wproj = (raw['proj_w'] * s_pr[:, None]).T                  # (C_in, C_out)
    wp_a = wproj[:pdim, :]
    wp_b = wproj.at[:pdim, :].set(0.0)

    w1 = (raw['pw1_w'] * s_p1[:, None]).T                      # (C, 2C)
    w2 = (raw['pw2_w'] * s_p2[:, None]).T                      # (2C, C)

    return dict(
        dw_eff=dw_eff, b_dw=b_dw[None, :],
        ch_mask=ch_mask[None, :], gn_g=gn_g_p[None, :], gn_b=gn_b_p[None, :],
        wq=wq_p, bq=bq[None, :], wk=wk_p, bk=bk[None, :], wv=wv_p, bv=bv[None, :],
        wp_a=wp_a, wp_b=wp_b, bproj=b_pr[None, :],
        w1=w1, b1=b_p1[None, :], w2=w2, b2=b_p2[None, :],
    )


# --------------------------------------------------------------------------
# Pure-JAX NCHW reference (mirrors the PyTorch module, BN/GN in eval mode)
# --------------------------------------------------------------------------
def reference_nchw(x, raw, qk_dim, pdim):
    prec = lax.Precision.HIGHEST
    B, C, H, W = x.shape
    N = H * W

    def bn_apply(y, bn):
        s = bn['gamma'] / jnp.sqrt(bn['var'] + EPS)
        b = bn['beta'] - bn['mean'] * s
        return y * s[None, :, None, None] + b[None, :, None, None]

    # Residual depthwise conv
    dw = raw['dw_w'][:, None, :, :]                            # (C,1,3,3)
    y = lax.conv_general_dilated(x, dw, (1, 1), ((1, 1), (1, 1)),
                                 dimension_numbers=('NCHW', 'OIHW', 'NCHW'),
                                 feature_group_count=C, precision=prec)
    x = x + bn_apply(y, raw['bn_dw'])

    # Residual SHSA mixer
    x1, x2 = x[:, :pdim], x[:, pdim:]
    mu = jnp.mean(x1, axis=(1, 2, 3), keepdims=True)
    var = jnp.mean((x1 - mu) ** 2, axis=(1, 2, 3), keepdims=True)
    x1n = (x1 - mu) / jnp.sqrt(var + GN_EPS)
    x1n = x1n * raw['gn_g'][None, :, None, None] + raw['gn_b'][None, :, None, None]

    qkv = jnp.einsum('bchw,oc->bohw', x1n, raw['qkv_w'], precision=prec)
    qkv = bn_apply(qkv, raw['bn_qkv'])
    q, k, v = (qkv[:, :qk_dim], qkv[:, qk_dim:2 * qk_dim], qkv[:, 2 * qk_dim:])
    qf, kf, vf = (q.reshape(B, qk_dim, N), k.reshape(B, qk_dim, N),
                  v.reshape(B, pdim, N))
    attn = jnp.einsum('bcn,bcm->bnm', qf, kf, precision=prec) * (qk_dim ** -0.5)
    attn = jax.nn.softmax(attn, axis=-1)
    x1o = jnp.einsum('bcm,bnm->bcn', vf, attn, precision=prec).reshape(B, pdim, H, W)

    cat = jnp.concatenate([x1o, x2], axis=1)
    pr = jnp.einsum('bchw,oc->bohw', jnp.maximum(cat, 0.0), raw['proj_w'],
                    precision=prec)
    x = x + bn_apply(pr, raw['bn_proj'])

    # Residual FFN
    h = jnp.einsum('bchw,oc->bohw', x, raw['pw1_w'], precision=prec)
    h = jnp.maximum(bn_apply(h, raw['bn_pw1']), 0.0)
    f = jnp.einsum('bchw,oc->bohw', h, raw['pw2_w'], precision=prec)
    return x + bn_apply(f, raw['bn_pw2'])


if __name__ == "__main__":
    key = jax.random.PRNGKey(0)
    kx, kp = jax.random.split(key)

    # Small SHViT-like config; dim=128 keeps the channel (lane) axis dense.
    B, dim, H, W = 2, 128, 8, 8
    qk_dim, pdim = 16, 32

    x = jax.random.normal(kx, (B, dim, H, W), jnp.float32)
    raw = init_raw_params(kp, dim, qk_dim, pdim)
    folded = fold_params(raw, dim, qk_dim, pdim)

    out = basic_block_pallas(x, folded)
    out = jax.block_until_ready(out)
    assert out.shape == (B, dim, H, W)

    ref = reference_nchw(x, raw, qk_dim, pdim)
    np.testing.assert_allclose(np.asarray(out), np.asarray(ref), atol=1e-2, rtol=1e-2)

    print("KERNEL_OK")
</pallas_src>

<mosaic_0001>
module attributes {stable_mosaic.version = 11 : i64} {
  func.func @_basic_block_kernel(%arg0: i32, %arg1: memref<1x8x8x128xf32, #tpu.memory_space<vmem>>, %arg2: memref<9x128xf32, #tpu.memory_space<vmem>>, %arg3: memref<1x128xf32, #tpu.memory_space<vmem>>, %arg4: memref<1x128xf32, #tpu.memory_space<vmem>>, %arg5: memref<1x128xf32, #tpu.memory_space<vmem>>, %arg6: memref<1x128xf32, #tpu.memory_space<vmem>>, %arg7: memref<128x16xf32, #tpu.memory_space<vmem>>, %arg8: memref<1x16xf32, #tpu.memory_space<vmem>>, %arg9: memref<128x16xf32, #tpu.memory_space<vmem>>, %arg10: memref<1x16xf32, #tpu.memory_space<vmem>>, %arg11: memref<128x32xf32, #tpu.memory_space<vmem>>, %arg12: memref<1x32xf32, #tpu.memory_space<vmem>>, %arg13: memref<32x128xf32, #tpu.memory_space<vmem>>, %arg14: memref<128x128xf32, #tpu.memory_space<vmem>>, %arg15: memref<1x128xf32, #tpu.memory_space<vmem>>, %arg16: memref<128x256xf32, #tpu.memory_space<vmem>>, %arg17: memref<1x256xf32, #tpu.memory_space<vmem>>, %arg18: memref<256x128xf32, #tpu.memory_space<vmem>>, %arg19: memref<1x128xf32, #tpu.memory_space<vmem>>, %arg20: memref<1x8x8x128xf32, #tpu.memory_space<vmem>>, %arg21: memref<10x10x128xf32, #tpu.memory_space<vmem>>) attributes {dimension_semantics = [#tpu.dimension_semantics<parallel>], iteration_bounds = array<i64: 2>, scalar_prefetch = 0 : i64, scratch_operands = 1 : i64, tpu.core_type = #tpu.core_type<tc>, window_params = [{transform_indices = @transform_0, window_bounds = array<i64: 1, 8, 8, 128>}, {pipeline_mode = #tpu.pipeline_mode<synchronous>, transform_indices = @transform_1, window_bounds = array<i64: 9, 128>}, {pipeline_mode = #tpu.pipeline_mode<synchronous>, transform_indices = @transform_2, window_bounds = array<i64: 1, 128>}, {pipeline_mode = #tpu.pipeline_mode<synchronous>, transform_indices = @transform_3, window_bounds = array<i64: 1, 128>}, {pipeline_mode = #tpu.pipeline_mode<synchronous>, transform_indices = @transform_4, window_bounds = array<i64: 1, 128>}, {pipeline_mode = #tpu.pipeline_mode<synchronous>, transform_indices = @transform_5, window_bounds = array<i64: 1, 128>}, {pipeline_mode = #tpu.pipeline_mode<synchronous>, transform_indices = @transform_6, window_bounds = array<i64: 128, 16>}, {pipeline_mode = #tpu.pipeline_mode<synchronous>, transform_indices = @transform_7, window_bounds = array<i64: 1, 16>}, {pipeline_mode = #tpu.pipeline_mode<synchronous>, transform_indices = @transform_8, window_bounds = array<i64: 128, 16>}, {pipeline_mode = #tpu.pipeline_mode<synchronous>, transform_indices = @transform_9, window_bounds = array<i64: 1, 16>}, {pipeline_mode = #tpu.pipeline_mode<synchronous>, transform_indices = @transform_10, window_bounds = array<i64: 128, 32>}, {pipeline_mode = #tpu.pipeline_mode<synchronous>, transform_indices = @transform_11, window_bounds = array<i64: 1, 32>}, {pipeline_mode = #tpu.pipeline_mode<synchronous>, transform_indices = @transform_12, window_bounds = array<i64: 32, 128>}, {pipeline_mode = #tpu.pipeline_mode<synchronous>, transform_indices = @transform_13, window_bounds = array<i64: 128, 128>}, {pipeline_mode = #tpu.pipeline_mode<synchronous>, transform_indices = @transform_14, window_bounds = array<i64: 1, 128>}, {pipeline_mode = #tpu.pipeline_mode<synchronous>, transform_indices = @transform_15, window_bounds = array<i64: 128, 256>}, {pipeline_mode = #tpu.pipeline_mode<synchronous>, transform_indices = @transform_16, window_bounds = array<i64: 1, 256>}, {pipeline_mode = #tpu.pipeline_mode<synchronous>, transform_indices = @transform_17, window_bounds = array<i64: 256, 128>}, {pipeline_mode = #tpu.pipeline_mode<synchronous>, transform_indices = @transform_18, window_bounds = array<i64: 1, 128>}, {transform_indices = @transform_19, window_bounds = array<i64: 1, 8, 8, 128>}]} {
    %c0 = arith.constant 0 : index
    %c0_0 = arith.constant 0 : index
    %c0_1 = arith.constant 0 : index
    %c0_2 = arith.constant 0 : index
    %0 = vector.load %arg1[%c0, %c0_0, %c0_1, %c0_2] : memref<1x8x8x128xf32, #tpu.memory_space<vmem>>, vector<1x8x8x128xf32>
    %1 = vector.shape_cast %0 : vector<1x8x8x128xf32> to vector<8x8x128xf32>
    %cst = arith.constant 0.000000e+00 : f32
    %2 = vector.broadcast %cst : f32 to vector<10x10x128xf32>
    %c0_3 = arith.constant 0 : index
    %c0_4 = arith.constant 0 : index
    %c0_5 = arith.constant 0 : index
    %3 = vector.load %arg21[%c0_3, %c0_4, %c0_5] : memref<10x10x128xf32, #tpu.memory_space<vmem>>, vector<10x10x128xf32>
    tpu.vector_store %arg21[%c0_3, %c0_4, %c0_5], %2 {strides = array<i32>} : memref<10x10x128xf32, #tpu.memory_space<vmem>>, vector<10x10x128xf32>,
    %c1 = arith.constant 1 : index
    %c1_6 = arith.constant 1 : index
    %c0_7 = arith.constant 0 : index
    %4 = vector.load %arg21[%c1, %c1_6, %c0_7] : memref<10x10x128xf32, #tpu.memory_space<vmem>>, vector<8x8x128xf32>
    tpu.vector_store %arg21[%c1, %c1_6, %c0_7], %1 {strides = array<i32>} : memref<10x10x128xf32, #tpu.memory_space<vmem>>, vector<8x8x128xf32>,
    %c0_8 = arith.constant 0 : index
    %c0_9 = arith.constant 0 : index
    %5 = vector.load %arg2[%c0_8, %c0_9] : memref<9x128xf32, #tpu.memory_space<vmem>>, vector<9x128xf32>
    %cst_10 = arith.constant 0.000000e+00 : f32
    %6 = vector.broadcast %cst_10 : f32 to vector<64x128xf32>
    %c0_11 = arith.constant 0 : index
    %c0_12 = arith.constant 0 : index
    %c0_13 = arith.constant 0 : index
    %7 = vector.load %arg21[%c0_11, %c0_12, %c0_13] : memref<10x10x128xf32, #tpu.memory_space<vmem>>, vector<8x8x128xf32>
    %8 = vector.shape_cast %7 : vector<8x8x128xf32> to vector<64x128xf32>
    %9 = vector.extract_strided_slice %5 {offsets = [0, 0], sizes = [1, 128], strides = [1, 1]} : vector<9x128xf32> to vector<1x128xf32>
    %10 = vector.broadcast %9 : vector<1x128xf32> to vector<64x128xf32>
    %11 = arith.mulf %8, %10 : vector<64x128xf32>
    %12 = arith.addf %6, %11 : vector<64x128xf32>
    %c0_14 = arith.constant 0 : index
    %c1_15 = arith.constant 1 : index
    %c0_16 = arith.constant 0 : index
    %13 = vector.load %arg21[%c0_14, %c1_15, %c0_16] : memref<10x10x128xf32, #tpu.memory_space<vmem>>, vector<8x8x128xf32>
    %14 = vector.shape_cast %13 : vector<8x8x128xf32> to vector<64x128xf32>
    %15 = vector.extract_strided_slice %5 {offsets = [1, 0], sizes = [1, 128], strides = [1, 1]} : vector<9x128xf32> to vector<1x128xf32>
    %16 = vector.broadcast %15 : vector<1x128xf32> to vector<64x128xf32>
    %17 = arith.mulf %14, %16 : vector<64x128xf32>
    %18 = arith.addf %12, %17 : vector<64x128xf32>
    %c0_17 = arith.constant 0 : index
    %c2 = arith.constant 2 : index
    %c0_18 = arith.constant 0 : index
    %19 = vector.load %arg21[%c0_17, %c2, %c0_18] : memref<10x10x128xf32, #tpu.memory_space<vmem>>, vector<8x8x128xf32>
    %20 = vector.shape_cast %19 : vector<8x8x128xf32> to vector<64x128xf32>
    %21 = vector.extract_strided_slice %5 {offsets = [2, 0], sizes = [1, 128], strides = [1, 1]} : vector<9x128xf32> to vector<1x128xf32>
    %22 = vector.broadcast %21 : vector<1x128xf32> to vector<64x128xf32>
    %23 = arith.mulf %20, %22 : vector<64x128xf32>
    %24 = arith.addf %18, %23 : vector<64x128xf32>
    %c1_19 = arith.constant 1 : index
    %c0_20 = arith.constant 0 : index
    %c0_21 = arith.constant 0 : index
    %25 = vector.load %arg21[%c1_19, %c0_20, %c0_21] : memref<10x10x128xf32, #tpu.memory_space<vmem>>, vector<8x8x128xf32>
    %26 = vector.shape_cast %25 : vector<8x8x128xf32> to vector<64x128xf32>
    %27 = vector.extract_strided_slice %5 {offsets = [3, 0], sizes = [1, 128], strides = [1, 1]} : vector<9x128xf32> to vector<1x128xf32>
    %28 = vector.broadcast %27 : vector<1x128xf32> to vector<64x128xf32>
    %29 = arith.mulf %26, %28 : vector<64x128xf32>
    %30 = arith.addf %24, %29 : vector<64x128xf32>
    %c1_22 = arith.constant 1 : index
    %c1_23 = arith.constant 1 : index
    %c0_24 = arith.constant 0 : index
    %31 = vector.load %arg21[%c1_22, %c1_23, %c0_24] : memref<10x10x128xf32, #tpu.memory_space<vmem>>, vector<8x8x128xf32>
    %32 = vector.shape_cast %31 : vector<8x8x128xf32> to vector<64x128xf32>
    %33 = vector.extract_strided_slice %5 {offsets = [4, 0], sizes = [1, 128], strides = [1, 1]} : vector<9x128xf32> to vector<1x128xf32>
    %34 = vector.broadcast %33 : vector<1x128xf32> to vector<64x128xf32>
    %35 = arith.mulf %32, %34 : vector<64x128xf32>
    %36 = arith.addf %30, %35 : vector<64x128xf32>
    %c1_25 = arith.constant 1 : index
    %c2_26 = arith.constant 2 : index
    %c0_27 = arith.constant 0 : index
    %37 = vector.load %arg21[%c1_25, %c2_26, %c0_27] : memref<10x10x128xf32, #tpu.memory_space<vmem>>, vector<8x8x128xf32>
    %38 = vector.shape_cast %37 : vector<8x8x128xf32> to vector<64x128xf32>
    %39 = vector.extract_strided_slice %5 {offsets = [5, 0], sizes = [1, 128], strides = [1, 1]} : vector<9x128xf32> to vector<1x128xf32>
    %40 = vector.broadcast %39 : vector<1x128xf32> to vector<64x128xf32>
    %41 = arith.mulf %38, %40 : vector<64x128xf32>
    %42 = arith.addf %36, %41 : vector<64x128xf32>
    %c2_28 = arith.constant 2 : index
    %c0_29 = arith.constant 0 : index
    %c0_30 = arith.constant 0 : index
    %43 = vector.load %arg21[%c2_28, %c0_29, %c0_30] : memref<10x10x128xf32, #tpu.memory_space<vmem>>, vector<8x8x128xf32>
    %44 = vector.shape_cast %43 : vector<8x8x128xf32> to vector<64x128xf32>
    %45 = vector.extract_strided_slice %5 {offsets = [6, 0], sizes = [1, 128], strides = [1, 1]} : vector<9x128xf32> to vector<1x128xf32>
    %46 = vector.broadcast %45 : vector<1x128xf32> to vector<64x128xf32>
    %47 = arith.mulf %44, %46 : vector<64x128xf32>
    %48 = arith.addf %42, %47 : vector<64x128xf32>
    %c2_31 = arith.constant 2 : index
    %c1_32 = arith.constant 1 : index
    %c0_33 = arith.constant 0 : index
    %49 = vector.load %arg21[%c2_31, %c1_32, %c0_33] : memref<10x10x128xf32, #tpu.memory_space<vmem>>, vector<8x8x128xf32>
    %50 = vector.shape_cast %49 : vector<8x8x128xf32> to vector<64x128xf32>
    %51 = vector.extract_strided_slice %5 {offsets = [7, 0], sizes = [1, 128], strides = [1, 1]} : vector<9x128xf32> to vector<1x128xf32>
    %52 = vector.broadcast %51 : vector<1x128xf32> to vector<64x128xf32>
    %53 = arith.mulf %50, %52 : vector<64x128xf32>
    %54 = arith.addf %48, %53 : vector<64x128xf32>
    %c2_34 = arith.constant 2 : index
    %c2_35 = arith.constant 2 : index
    %c0_36 = arith.constant 0 : index
    %55 = vector.load %arg21[%c2_34, %c2_35, %c0_36] : memref<10x10x128xf32, #tpu.memory_space<vmem>>, vector<8x8x128xf32>
    %56 = vector.shape_cast %55 : vector<8x8x128xf32> to vector<64x128xf32>
    %57 = vector.extract_strided_slice %5 {offsets = [8, 0], sizes = [1, 128], strides = [1, 1]} : vector<9x128xf32> to vector<1x128xf32>
    %58 = vector.broadcast %57 : vector<1x128xf32> to vector<64x128xf32>
    %59 = arith.mulf %56, %58 : vector<64x128xf32>
    %60 = arith.addf %54, %59 : vector<64x128xf32>
    %61 = vector.shape_cast %1 : vector<8x8x128xf32> to vector<64x128xf32>
    %62 = arith.addf %61, %60 : vector<64x128xf32>
    %c0_37 = arith.constant 0 : index
    %c0_38 = arith.constant 0 : index
    %63 = vector.load %arg3[%c0_37, %c0_38] : memref<1x128xf32, #tpu.memory_space<vmem>>, vector<1x128xf32>
    %64 = vector.broadcast %63 : vector<1x128xf32> to vector<64x128xf32>
    %65 = arith.addf %62, %64 : vector<64x128xf32>
    %c0_39 = arith.constant 0 : index
    %c0_40 = arith.constant 0 : index
    %66 = vector.load %arg4[%c0_39, %c0_40] : memref<1x128xf32, #tpu.memory_space<vmem>>, vector<1x128xf32>
    %67 = vector.broadcast %66 : vector<1x128xf32> to vector<64x128xf32>
    %68 = arith.mulf %65, %67 : vector<64x128xf32>
    %69 = vector.shape_cast %68 : vector<64x128xf32> to vector<1x64x128xf32>
    %cst_41 = arith.constant dense<0.000000e+00> : vector<1xf32>
    %70 = vector.multi_reduction <add>, %69, %cst_41 [1, 2] : vector<1x64x128xf32> to vector<1xf32>
    %71 = vector.shape_cast %70 : vector<1xf32> to vector<1x1x1xf32>
    %72 = vector.extract %71[0, 0, 0] : f32 from vector<1x1x1xf32>
    %cst_42 = arith.constant 2.048000e+03 : f32
    %73 = arith.divf %72, %cst_42 : f32
    %74 = vector.broadcast %73 : f32 to vector<64x128xf32>
    %75 = arith.subf %65, %74 : vector<64x128xf32>
    %76 = arith.mulf %75, %75 : vector<64x128xf32>
    %77 = vector.broadcast %66 : vector<1x128xf32> to vector<64x128xf32>
    %78 = arith.mulf %76, %77 : vector<64x128xf32>
    %79 = vector.shape_cast %78 : vector<64x128xf32> to vector<1x64x128xf32>
    %cst_43 = arith.constant dense<0.000000e+00> : vector<1xf32>
    %80 = vector.multi_reduction <add>, %79, %cst_43 [1, 2] : vector<1x64x128xf32> to vector<1xf32>
    %81 = vector.shape_cast %80 : vector<1xf32> to vector<1x1x1xf32>
    %82 = vector.extract %81[0, 0, 0] : f32 from vector<1x1x1xf32>
    %cst_44 = arith.constant 2.048000e+03 : f32
    %83 = arith.divf %82, %cst_44 : f32
    %84 = vector.broadcast %73 : f32 to vector<64x128xf32>
    %85 = arith.subf %65, %84 : vector<64x128xf32>
    %cst_45 = arith.constant 9.99999974E-6 : f32
    %86 = arith.addf %83, %cst_45 : f32
    %87 = math.rsqrt %86 : f32
    %88 = vector.broadcast %87 : f32 to vector<64x128xf32>
    %89 = arith.mulf %85, %88 : vector<64x128xf32>
    %c0_46 = arith.constant 0 : index
    %c0_47 = arith.constant 0 : index
    %90 = vector.load %arg5[%c0_46, %c0_47] : memref<1x128xf32, #tpu.memory_space<vmem>>, vector<1x128xf32>
    %91 = vector.broadcast %90 : vector<1x128xf32> to vector<64x128xf32>
    %92 = arith.mulf %89, %91 : vector<64x128xf32>
    %c0_48 = arith.constant 0 : index
    %c0_49 = arith.constant 0 : index
    %93 = vector.load %arg6[%c0_48, %c0_49] : memref<1x128xf32, #tpu.memory_space<vmem>>, vector<1x128xf32>
    %94 = vector.broadcast %93 : vector<1x128xf32> to vector<64x128xf32>
    %95 = arith.addf %92, %94 : vector<64x128xf32>
    %c0_50 = arith.constant 0 : index
    %c0_51 = arith.constant 0 : index
    %96 = vector.load %arg7[%c0_50, %c0_51] : memref<128x16xf32, #tpu.memory_space<vmem>>, vector<128x16xf32>
    %cst_52 = arith.constant dense<0.000000e+00> : vector<64x16xf32>
    %97 = tpu.matmul %95, %96, %cst_52 {dimension_numbers = #tpu.dot_dimension_numbers<[1], [0], [0], [1], [0, 0, 1, 1], [], []>} : vector<64x128xf32>, vector<128x16xf32>, vector<64x16xf32> -> vector<64x16xf32>
    %c0_53 = arith.constant 0 : index
    %c0_54 = arith.constant 0 : index
    %98 = vector.load %arg8[%c0_53, %c0_54] : memref<1x16xf32, #tpu.memory_space<vmem>>, vector<1x16xf32>
    %99 = vector.broadcast %98 : vector<1x16xf32> to vector<64x16xf32>
    %100 = arith.addf %97, %99 : vector<64x16xf32>
    %c0_55 = arith.constant 0 : index
    %c0_56 = arith.constant 0 : index
    %101 = vector.load %arg9[%c0_55, %c0_56] : memref<128x16xf32, #tpu.memory_space<vmem>>, vector<128x16xf32>
    %cst_57 = arith.constant dense<0.000000e+00> : vector<64x16xf32>
    %102 = tpu.matmul %95, %101, %cst_57 {dimension_numbers = #tpu.dot_dimension_numbers<[1], [0], [0], [1], [0, 0, 1, 1], [], []>} : vector<64x128xf32>, vector<128x16xf32>, vector<64x16xf32> -> vector<64x16xf32>
    %c0_58 = arith.constant 0 : index
    %c0_59 = arith.constant 0 : index
    %103 = vector.load %arg10[%c0_58, %c0_59] : memref<1x16xf32, #tpu.memory_space<vmem>>, vector<1x16xf32>
    %104 = vector.broadcast %103 : vector<1x16xf32> to vector<64x16xf32>
    %105 = arith.addf %102, %104 : vector<64x16xf32>
    %c0_60 = arith.constant 0 : index
    %c0_61 = arith.constant 0 : index
    %106 = vector.load %arg11[%c0_60, %c0_61] : memref<128x32xf32, #tpu.memory_space<vmem>>, vector<128x32xf32>
    %cst_62 = arith.constant dense<0.000000e+00> : vector<64x32xf32>
    %107 = tpu.matmul %95, %106, %cst_62 {dimension_numbers = #tpu.dot_dimension_numbers<[1], [0], [0], [1], [0, 0, 1, 1], [], []>} : vector<64x128xf32>, vector<128x32xf32>, vector<64x32xf32> -> vector<64x32xf32>
    %c0_63 = arith.constant 0 : index
    %c0_64 = arith.constant 0 : index
    %108 = vector.load %arg12[%c0_63, %c0_64] : memref<1x32xf32, #tpu.memory_space<vmem>>, vector<1x32xf32>
    %109 = vector.broadcast %108 : vector<1x32xf32> to vector<64x32xf32>
    %110 = arith.addf %107, %109 : vector<64x32xf32>
    %cst_65 = arith.constant dense<0.000000e+00> : vector<64x64xf32>
    %111 = tpu.matmul %100, %105, %cst_65 {dimension_numbers = #tpu.dot_dimension_numbers<[1], [1], [0], [0], [0, 0, 1, 0], [], []>} : vector<64x16xf32>, vector<64x16xf32>, vector<64x64xf32> -> vector<64x64xf32>
    %cst_66 = arith.constant 2.500000e-01 : f32
    %112 = vector.broadcast %cst_66 : f32 to vector<64x64xf32>
    %113 = arith.mulf %111, %112 : vector<64x64xf32>
    %cst_67 = arith.constant dense<0xFF800000> : vector<64xf32>
    %114 = vector.multi_reduction <maximumf>, %113, %cst_67 [1] : vector<64x64xf32> to vector<64xf32>
    %115 = vector.shape_cast %114 : vector<64xf32> to vector<64x1xf32>
    %116 = vector.broadcast %115 : vector<64x1xf32> to vector<64x64xf32>
    %117 = arith.subf %113, %116 : vector<64x64xf32>
    %118 = math.exp %117 : vector<64x64xf32>
    %cst_68 = arith.constant dense<0.000000e+00> : vector<64xf32>
    %119 = vector.multi_reduction <add>, %118, %cst_68 [1] : vector<64x64xf32> to vector<64xf32>
    %120 = vector.shape_cast %119 : vector<64xf32> to vector<64x1xf32>
    %121 = vector.broadcast %120 : vector<64x1xf32> to vector<64x64xf32>
    %122 = arith.divf %118, %121 : vector<64x64xf32>
    %cst_69 = arith.constant dense<0.000000e+00> : vector<64x32xf32>
    %123 = tpu.matmul %122, %110, %cst_69 {dimension_numbers = #tpu.dot_dimension_numbers<[1], [0], [0], [1], [0, 0, 1, 1], [], []>} : vector<64x64xf32>, vector<64x32xf32>, vector<64x32xf32> -> vector<64x32xf32>
    %cst_70 = arith.constant 0.000000e+00 : f32
    %124 = vector.broadcast %cst_70 : f32 to vector<64x32xf32>
    %125 = arith.maximumf %123, %124 : vector<64x32xf32>
    %c0_71 = arith.constant 0 : index
    %c0_72 = arith.constant 0 : index
    %126 = vector.load %arg13[%c0_71, %c0_72] : memref<32x128xf32, #tpu.memory_space<vmem>>, vector<32x128xf32>
    %cst_73 = arith.constant dense<0.000000e+00> : vector<64x128xf32>
    %127 = tpu.matmul %125, %126, %cst_73 {dimension_numbers = #tpu.dot_dimension_numbers<[1], [0], [0], [1], [0, 0, 1, 1], [], []>} : vector<64x32xf32>, vector<32x128xf32>, vector<64x128xf32> -> vector<64x128xf32>
    %cst_74 = arith.constant 0.000000e+00 : f32
    %128 = vector.broadcast %cst_74 : f32 to vector<64x128xf32>
    %129 = arith.maximumf %65, %128 : vector<64x128xf32>
    %c0_75 = arith.constant 0 : index
    %c0_76 = arith.constant 0 : index
    %130 = vector.load %arg14[%c0_75, %c0_76] : memref<128x128xf32, #tpu.memory_space<vmem>>, vector<128x128xf32>
    %cst_77 = arith.constant dense<0.000000e+00> : vector<64x128xf32>
    %131 = tpu.matmul %129, %130, %cst_77 {dimension_numbers = #tpu.dot_dimension_numbers<[1], [0], [0], [1], [0, 0, 1, 1], [], []>} : vector<64x128xf32>, vector<128x128xf32>, vector<64x128xf32> -> vector<64x128xf32>
    %132 = arith.addf %127, %131 : vector<64x128xf32>
    %c0_78 = arith.constant 0 : index
    %c0_79 = arith.constant 0 : index
    %133 = vector.load %arg15[%c0_78, %c0_79] : memref<1x128xf32, #tpu.memory_space<vmem>>, vector<1x128xf32>
    %134 = vector.broadcast %133 : vector<1x128xf32> to vector<64x128xf32>
    %135 = arith.addf %132, %134 : vector<64x128xf32>
    %136 = arith.addf %65, %135 : vector<64x128xf32>
    %c0_80 = arith.constant 0 : index
    %c0_81 = arith.constant 0 : index
    %137 = vector.load %arg16[%c0_80, %c0_81] : memref<128x256xf32, #tpu.memory_space<vmem>>, vector<128x256xf32>
    %cst_82 = arith.constant dense<0.000000e+00> : vector<64x256xf32>
    %138 = tpu.matmul %136, %137, %cst_82 {dimension_numbers = #tpu.dot_dimension_numbers<[1], [0], [0], [1], [0, 0, 1, 1], [], []>} : vector<64x128xf32>, vector<128x256xf32>, vector<64x256xf32> -> vector<64x256xf32>
    %c0_83 = arith.constant 0 : index
    %c0_84 = arith.constant 0 : index
    %139 = vector.load %arg17[%c0_83, %c0_84] : memref<1x256xf32, #tpu.memory_space<vmem>>, vector<1x256xf32>
    %140 = vector.broadcast %139 : vector<1x256xf32> to vector<64x256xf32>
    %141 = arith.addf %138, %140 : vector<64x256xf32>
    %cst_85 = arith.constant 0.000000e+00 : f32
    %142 = vector.broadcast %cst_85 : f32 to vector<64x256xf32>
    %143 = arith.maximumf %141, %142 : vector<64x256xf32>
    %c0_86 = arith.constant 0 : index
    %c0_87 = arith.constant 0 : index
    %144 = vector.load %arg18[%c0_86, %c0_87] : memref<256x128xf32, #tpu.memory_space<vmem>>, vector<256x128xf32>
    %cst_88 = arith.constant dense<0.000000e+00> : vector<64x128xf32>
    %145 = tpu.matmul %143, %144, %cst_88 {dimension_numbers = #tpu.dot_dimension_numbers<[1], [0], [0], [1], [0, 0, 1, 1], [], []>} : vector<64x256xf32>, vector<256x128xf32>, vector<64x128xf32> -> vector<64x128xf32>
    %c0_89 = arith.constant 0 : index
    %c0_90 = arith.constant 0 : index
    %146 = vector.load %arg19[%c0_89, %c0_90] : memref<1x128xf32, #tpu.memory_space<vmem>>, vector<1x128xf32>
    %147 = vector.broadcast %146 : vector<1x128xf32> to vector<64x128xf32>
    %148 = arith.addf %145, %147 : vector<64x128xf32>
    %149 = arith.addf %136, %148 : vector<64x128xf32>
    %150 = vector.shape_cast %149 : vector<64x128xf32> to vector<8x8x128xf32>
    %c0_91 = arith.constant 0 : index
    %c0_92 = arith.constant 0 : index
    %c0_93 = arith.constant 0 : index
    %c0_94 = arith.constant 0 : index
    %151 = vector.load %arg20[%c0_91, %c0_92, %c0_93, %c0_94] : memref<1x8x8x128xf32, #tpu.memory_space<vmem>>, vector<1x8x8x128xf32>
    %152 = vector.shape_cast %151 : vector<1x8x8x128xf32> to vector<8x8x128xf32>
    %153 = vector.shape_cast %150 : vector<8x8x128xf32> to vector<1x8x8x128xf32>
    tpu.vector_store %arg20[%c0_91, %c0_92, %c0_93, %c0_94], %153 {strides = array<i32>} : memref<1x8x8x128xf32, #tpu.memory_space<vmem>>, vector<1x8x8x128xf32>,
    return
  }
  func.func @transform_0(%arg0: i32) -> (i32, i32, i32, i32) {
    %c0_i32 = arith.constant 0 : i32
    %c0_i32_0 = arith.constant 0 : i32
    %c0_i32_1 = arith.constant 0 : i32
    %c0_i32_2 = arith.constant 0 : i32
    return %arg0, %c0_i32, %c0_i32_0, %c0_i32_1 : i32, i32, i32, i32
  }
  func.func @transform_1(%arg0: i32) -> (i32, i32) {
    %c0_i32 = arith.constant 0 : i32
    %c0_i32_0 = arith.constant 0 : i32
    %c0_i32_1 = arith.constant 0 : i32
    return %c0_i32, %c0_i32_0 : i32, i32
  }
  func.func @transform_2(%arg0: i32) -> (i32, i32) {
    %c0_i32 = arith.constant 0 : i32
    %c0_i32_0 = arith.constant 0 : i32
    %c0_i32_1 = arith.constant 0 : i32
    return %c0_i32, %c0_i32_0 : i32, i32
  }
  func.func @transform_3(%arg0: i32) -> (i32, i32) {
    %c0_i32 = arith.constant 0 : i32
    %c0_i32_0 = arith.constant 0 : i32
    %c0_i32_1 = arith.constant 0 : i32
    return %c0_i32, %c0_i32_0 : i32, i32
  }
  func.func @transform_4(%arg0: i32) -> (i32, i32) {
    %c0_i32 = arith.constant 0 : i32
    %c0_i32_0 = arith.constant 0 : i32
    %c0_i32_1 = arith.constant 0 : i32
    return %c0_i32, %c0_i32_0 : i32, i32
  }
  func.func @transform_5(%arg0: i32) -> (i32, i32) {
    %c0_i32 = arith.constant 0 : i32
    %c0_i32_0 = arith.constant 0 : i32
    %c0_i32_1 = arith.constant 0 : i32
    return %c0_i32, %c0_i32_0 : i32, i32
  }
  func.func @transform_6(%arg0: i32) -> (i32, i32) {
    %c0_i32 = arith.constant 0 : i32
    %c0_i32_0 = arith.constant 0 : i32
    %c0_i32_1 = arith.constant 0 : i32
    return %c0_i32, %c0_i32_0 : i32, i32
  }
  func.func @transform_7(%arg0: i32) -> (i32, i32) {
    %c0_i32 = arith.constant 0 : i32
    %c0_i32_0 = arith.constant 0 : i32
    %c0_i32_1 = arith.constant 0 : i32
    return %c0_i32, %c0_i32_0 : i32, i32
  }
  func.func @transform_8(%arg0: i32) -> (i32, i32) {
    %c0_i32 = arith.constant 0 : i32
    %c0_i32_0 = arith.constant 0 : i32
    %c0_i32_1 = arith.constant 0 : i32
    return %c0_i32, %c0_i32_0 : i32, i32
  }
  func.func @transform_9(%arg0: i32) -> (i32, i32) {
    %c0_i32 = arith.constant 0 : i32
    %c0_i32_0 = arith.constant 0 : i32
    %c0_i32_1 = arith.constant 0 : i32
    return %c0_i32, %c0_i32_0 : i32, i32
  }
  func.func @transform_10(%arg0: i32) -> (i32, i32) {
    %c0_i32 = arith.constant 0 : i32
    %c0_i32_0 = arith.constant 0 : i32
    %c0_i32_1 = arith.constant 0 : i32
    return %c0_i32, %c0_i32_0 : i32, i32
  }
  func.func @transform_11(%arg0: i32) -> (i32, i32) {
    %c0_i32 = arith.constant 0 : i32
    %c0_i32_0 = arith.constant 0 : i32
    %c0_i32_1 = arith.constant 0 : i32
    return %c0_i32, %c0_i32_0 : i32, i32
  }
  func.func @transform_12(%arg0: i32) -> (i32, i32) {
    %c0_i32 = arith.constant 0 : i32
    %c0_i32_0 = arith.constant 0 : i32
    %c0_i32_1 = arith.constant 0 : i32
    return %c0_i32, %c0_i32_0 : i32, i32
  }
  func.func @transform_13(%arg0: i32) -> (i32, i32) {
    %c0_i32 = arith.constant 0 : i32
    %c0_i32_0 = arith.constant 0 : i32
    %c0_i32_1 = arith.constant 0 : i32
    return %c0_i32, %c0_i32_0 : i32, i32
  }
  func.func @transform_14(%arg0: i32) -> (i32, i32) {
    %c0_i32 = arith.constant 0 : i32
    %c0_i32_0 = arith.constant 0 : i32
    %c0_i32_1 = arith.constant 0 : i32
    return %c0_i32, %c0_i32_0 : i32, i32
  }
  func.func @transform_15(%arg0: i32) -> (i32, i32) {
    %c0_i32 = arith.constant 0 : i32
    %c0_i32_0 = arith.constant 0 : i32
    %c0_i32_1 = arith.constant 0 : i32
    return %c0_i32, %c0_i32_0 : i32, i32
  }
  func.func @transform_16(%arg0: i32) -> (i32, i32) {
    %c0_i32 = arith.constant 0 : i32
    %c0_i32_0 = arith.constant 0 : i32
    %c0_i32_1 = arith.constant 0 : i32
    return %c0_i32, %c0_i32_0 : i32, i32
  }
  func.func @transform_17(%arg0: i32) -> (i32, i32) {
    %c0_i32 = arith.constant 0 : i32
    %c0_i32_0 = arith.constant 0 : i32
    %c0_i32_1 = arith.constant 0 : i32
    return %c0_i32, %c0_i32_0 : i32, i32
  }
  func.func @transform_18(%arg0: i32) -> (i32, i32) {
    %c0_i32 = arith.constant 0 : i32
    %c0_i32_0 = arith.constant 0 : i32
    %c0_i32_1 = arith.constant 0 : i32
    return %c0_i32, %c0_i32_0 : i32, i32
  }
  func.func @transform_19(%arg0: i32) -> (i32, i32, i32, i32) {
    %c0_i32 = arith.constant 0 : i32
    %c0_i32_0 = arith.constant 0 : i32
    %c0_i32_1 = arith.constant 0 : i32
    %c0_i32_2 = arith.constant 0 : i32
    return %arg0, %c0_i32, %c0_i32_0, %c0_i32_1 : i32, i32, i32, i32
  }
}

</mosaic_0001>

<llo_original>
// kernel: tpu_custom_call.1
$region0: #{tpu_custom_call.1}
  #allocation0 [shape = 'u32[]', space=smem, size = 0x4, offset = 0x4, fixed_abs, tag = 'smem constant byte address 0x4 - core index']
  #allocation1 [shape = 'u32[72,128]{1,0:T(1,128)}', space=vmem, size = 0x9000, scoped, tag = 'internal scratch']
  #allocation2 [shape = 'f32[10,10,128]{2,1,0:T(8,128)}', space=vmem, size = 0x14000, scoped, tag = 'scratch operand']
  %s0 = inlined_call_operand.vmem [shape: f32[2,8,8,128], index: 0, kind: input, shape index: {}]
  %s1 = inlined_call_operand.vmem [shape: f32[9,128], index: 1, kind: input, shape index: {}]
  %s2 = inlined_call_operand.hbm [shape: f32[1,128], index: 2, kind: input, shape index: {}]
  %s3 = inlined_call_operand.hbm [shape: f32[1,128], index: 3, kind: input, shape index: {}]
  %s4 = inlined_call_operand.hbm [shape: f32[1,128], index: 4, kind: input, shape index: {}]
  %s5 = inlined_call_operand.vmem [shape: f32[1,128], index: 5, kind: input, shape index: {}]
  %s6 = inlined_call_operand.vmem [shape: f32[128,16], index: 6, kind: input, shape index: {}]
  %s7 = inlined_call_operand.vmem [shape: f32[1,16], index: 7, kind: input, shape index: {}]
  %s8 = inlined_call_operand.vmem [shape: f32[128,16], index: 8, kind: input, shape index: {}]
  %s9 = inlined_call_operand.hbm [shape: f32[1,16], index: 9, kind: input, shape index: {}]
  %s10 = inlined_call_operand.vmem [shape: f32[128,32], index: 10, kind: input, shape index: {}]
  %s11 = inlined_call_operand.vmem [shape: f32[1,32], index: 11, kind: input, shape index: {}]
  %s12 = inlined_call_operand.hbm [shape: f32[32,128], index: 12, kind: input, shape index: {}]
  %s13 = inlined_call_operand.hbm [shape: f32[128,128], index: 13, kind: input, shape index: {}]
  %s14 = inlined_call_operand.vmem [shape: f32[1,128], index: 14, kind: input, shape index: {}]
  %s15 = inlined_call_operand.vmem [shape: f32[128,256], index: 15, kind: input, shape index: {}]
  %s16 = inlined_call_operand.vmem [shape: f32[1,256], index: 16, kind: input, shape index: {}]
  %s17 = inlined_call_operand.hbm [shape: f32[256,128], index: 17, kind: input, shape index: {}]
  %s18 = inlined_call_operand.vmem [shape: f32[1,128], index: 18, kind: input, shape index: {}]
  %s19 = inlined_call_operand.hbm [shape: f32[2,8,8,128], index: 19, kind: output, shape index: {}]
  %s20 = sld [smem:[#allocation0]]
  $region137: #{tpu_custom_call.1} parent=0
    _
  %s22 = ssub.s32 1, %s20
  %s23 = scalar_select 0, %s22, %s20
  $region1: #{tpu_custom_call.1} parent=0
    #allocation3 [shape = 'u8[512]{0}', space=vmem, size = 0x400, scoped, tag = 'input window, operand 2, single buffered']
    #allocation4 [shape = 's32[2]{0}', space=sflag, size = 0x8, scoped, tag = 'scoped memory for tpu_custom_call.1']
    #allocation5 [shape = 's32[2]{0}', space=sflag, size = 0x8, scoped, tag = 'scoped memory for tpu_custom_call.1']
    #allocation6 [shape = 'u8[512]{0}', space=vmem, size = 0x400, scoped, tag = 'input window, operand 3, single buffered']
    #allocation7 [shape = 's32[1]{0}', space=sflag, size = 0x4, scoped, tag = 'scoped memory for tpu_custom_call.1']
    #allocation8 [shape = 'u8[512]{0}', space=vmem, size = 0x400, scoped, tag = 'input window, operand 4, single buffered']
    #allocation9 [shape = 'u8[512]{0}', space=vmem, size = 0x400, scoped, tag = 'input window, operand 9, single buffered']
    #allocation10 [shape = 's32[1]{0}', space=sflag, size = 0x4, scoped, tag = 'scoped memory for tpu_custom_call.1']
    #allocation11 [shape = 'u8[16384]{0}', space=vmem, size = 0x4000, scoped, tag = 'input window, operand 12, single buffered']
    #allocation12 [shape = 'u8[65536]{0}', space=vmem, size = 0x10000, scoped, tag = 'input window, operand 13, single buffered']
    #allocation13 [shape = 's32[1]{0}', space=sflag, size = 0x4, scoped, tag = 'scoped memory for tpu_custom_call.1']
    #allocation14 [shape = 'u8[131072]{0}', space=vmem, size = 0x20000, scoped, tag = 'input window, operand 17, single buffered']
    #allocation15 [shape = 'u8[65536]{0}', space=vmem, size = 0x10000, scoped, tag = 'output window, operand 0']
    %24 = vsyncpa [#allocation4], 0
    %25 = vsyncpa [#allocation7], 0
    %26 = vsyncpa [#allocation10], 0
    %27 = vsyncpa [#allocation13], 0
    %28 = vsyncpa [#allocation5], 0
    %s29 = scalar_lea.sflag [#allocation5], 1
    %30 = vsyncpa %s29, 0
    loop: start=0, step=1, limit=4
    $region2: #{tpu_custom_call.1} parent=1 // loop_pre_header
      _
    $region3: #{tpu_custom_call.1} parent=1 // loop_header
      %s32 = sphi 0, %s36
      %p33 = scmp.ge.s32.totalorder %s32, 4
      %s42 = sphi 0, %s44
      %s45 = sphi 0, %s42
      %s46 = sphi 0, %s45
      %s62 = sphi 0, %s46
      %s66 = sphi 0, %s66
      %s68 = sphi 0, %s66
      %s69 = sphi 0, %s68
      %s83 = sphi 0, %s69
      %s87 = sphi 0, %s87
      %s89 = sphi 0, %s87
      %s90 = sphi 0, %s89
      %s104 = sphi 0, %s90
      %s108 = sphi 0, %s108
      %s110 = sphi 0, %s108
      %s111 = sphi 0, %s110
      %s125 = sphi 0, %s111
      %s129 = sphi 0, %s129
      %s131 = sphi 0, %s129
      %s132 = sphi 0, %s131
      %s146 = sphi 0, %s132
      %s150 = sphi 0, %s150
      %s152 = sphi 0, %s150
      %s153 = sphi 0, %s152
      %s167 = sphi 0, %s153
      %s171 = sphi 0, %s171
      %s173 = sphi 0, %s171
      %s174 = sphi 0, %s173
      %s188 = sphi 0, %s174
      %s192 = sphi 0, %s192
      %s194 = sphi 0, %s192
      %s195 = sphi 0, %s194
      %s209 = sphi 0, %s195
      %s213 = sphi 0, %s213
      %s215 = sphi 0, %s213
      %s216 = sphi 0, %s215
      %s230 = sphi 0, %s216
      %s234 = sphi 0, %s234
      %s236 = sphi 0, %s234
      %s237 = sphi 0, %s236
      %s251 = sphi 0, %s237
      %s255 = sphi 0, %s255
      %s257 = sphi 0, %s255
      %s258 = sphi 0, %s257
      %s272 = sphi 0, %s258
      %s276 = sphi 0, %s276
      %s278 = sphi 0, %s276
      %s279 = sphi 0, %s278
      %s293 = sphi 0, %s279
      %s297 = sphi 0, %s297
      %s299 = sphi 0, %s297
      %s300 = sphi 0, %s299
      %s314 = sphi 0, %s300
      %s318 = sphi 0, %s318
      %s320 = sphi 0, %s318
      %s321 = sphi 0, %s320
      %s335 = sphi 0, %s321
      %s339 = sphi 0, %s339
      %s341 = sphi 0, %s339
      %s342 = sphi 0, %s341
      %s356 = sphi 0, %s342
      %s360 = sphi 0, %s360
      %s362 = sphi 0, %s360
      %s363 = sphi 0, %s362
      %s377 = sphi 0, %s363
      %s381 = sphi 0, %s381
      %s383 = sphi 0, %s381
      %s384 = sphi 0, %s383
      %s398 = sphi 0, %s384
      %s402 = sphi 0, %s402
      %s404 = sphi 0, %s402
      %s405 = sphi 0, %s404
      %s419 = sphi 0, %s405
      %s423 = sphi 0, %s423
      %s425 = sphi 0, %s423
      %s426 = sphi 0, %s425
      %s440 = sphi 0, %s426
      %s446 = sphi 0, %s448
      %s449 = sphi 0, %s446
      %s450 = sphi 0, %s449
      %s466 = sphi 0, %s450
    $region4: #{tpu_custom_call.1} parent=1 // loop_header_branch
      %35 = sbr.rel (%p33) target = $region8
    $region5: #{tpu_custom_call.1} parent=1 // loop_body
      %s37 = ssub.s32 %s32, 1
      %s38 = ssub.s32 %s32, 2
      %s39 = sadd.s32 %s32, 1
      %s40 = ssub.s32 %s32, %s39
      %p41 = scmp.eq.s32.totalorder %s40, 0
      %s43 = sadd.s32 %s42, 1
      %s44 = scalar_select %p41, %s42, %s43
      %p47 = pneg %p41
      %p48 = scmp.eq.s32.totalorder %s32, 1
      %p49 = por %p47, %p48
      %p50 = scmp.ne.s32.totalorder %s42, %s45
      %p51 = scmp.eq.s32.totalorder %s32, 0
      %p52 = por %p50, %p51
      %p53 = scmp.ne.s32.totalorder %s42, %s45
      %p54 = scmp.eq.s32.totalorder %s37, 1
      %p55 = por %p53, %p54
      %p56 = scmp.ne.s32.totalorder %s45, %s46
      %p57 = scmp.eq.s32.totalorder %s37, 0
      %p58 = por %p56, %p57
      %p59 = scmp.ne.s32.totalorder %s45, %s46
      %p60 = scmp.eq.s32.totalorder %s38, 1
      %p61 = por %p59, %p60
      %p63 = scmp.ne.s32.totalorder %s46, %s62
      %p64 = scmp.eq.s32.totalorder %s38, 0
      %p65 = por %p63, %p64
      %s67 = sadd.s32 %s66, 1
      %p70 = scmp.eq.s32.totalorder %s32, 1
      %p71 = scmp.ne.s32.totalorder %s66, %s68
      %p72 = scmp.eq.s32.totalorder %s32, 0
      %p73 = por %p71, %p72
      %p74 = scmp.ne.s32.totalorder %s66, %s68
      %p75 = scmp.eq.s32.totalorder %s37, 1
      %p76 = por %p74, %p75
      %p77 = scmp.ne.s32.totalorder %s68, %s69
      %p78 = scmp.eq.s32.totalorder %s37, 0
      %p79 = por %p77, %p78
      %p80 = scmp.ne.s32.totalorder %s68, %s69
      %p81 = scmp.eq.s32.totalorder %s38, 1
      %p82 = por %p80, %p81
      %p84 = scmp.ne.s32.totalorder %s69, %s83
      %p85 = scmp.eq.s32.totalorder %s38, 0
      %p86 = por %p84, %p85
      %s88 = sadd.s32 %s87, 1
      %p91 = scmp.eq.s32.totalorder %s32, 1
      %p92 = scmp.ne.s32.totalorder %s87, %s89
      %p93 = scmp.eq.s32.totalorder %s32, 0
      %p94 = por %p92, %p93
      %p95 = scmp.ne.s32.totalorder %s87, %s89
      %p96 = scmp.eq.s32.totalorder %s37, 1
      %p97 = por %p95, %p96
      %p98 = scmp.ne.s32.totalorder %s89, %s90
      %p99 = scmp.eq.s32.totalorder %s37, 0
      %p100 = por %p98, %p99
      %p101 = scmp.ne.s32.totalorder %s89, %s90
      %p102 = scmp.eq.s32.totalorder %s38, 1
      %p103 = por %p101, %p102
      %p105 = scmp.ne.s32.totalorder %s90, %s104
      %p106 = scmp.eq.s32.totalorder %s38, 0
      %p107 = por %p105, %p106
      %s109 = sadd.s32 %s108, 1
      %p112 = scmp.eq.s32.totalorder %s32, 1
      %p113 = scmp.ne.s32.totalorder %s108, %s110
      %p114 = scmp.eq.s32.totalorder %s32, 0
      %p115 = por %p113, %p114
      %p116 = scmp.ne.s32.totalorder %s108, %s110
      %p117 = scmp.eq.s32.totalorder %s37, 1
      %p118 = por %p116, %p117
      %p119 = scmp.ne.s32.totalorder %s110, %s111
      %p120 = scmp.eq.s32.totalorder %s37, 0
      %p121 = por %p119, %p120
      %p122 = scmp.ne.s32.totalorder %s110, %s111
      %p123 = scmp.eq.s32.totalorder %s38, 1
      %p124 = por %p122, %p123
      %p126 = scmp.ne.s32.totalorder %s111, %s125
      %p127 = scmp.eq.s32.totalorder %s38, 0
      %p128 = por %p126, %p127
      %s130 = sadd.s32 %s129, 1
      %p133 = scmp.eq.s32.totalorder %s32, 1
      %p134 = scmp.ne.s32.totalorder %s129, %s131
      %p135 = scmp.eq.s32.totalorder %s32, 0
      %p136 = por %p134, %p135
      %p137 = scmp.ne.s32.totalorder %s129, %s131
      %p138 = scmp.eq.s32.totalorder %s37, 1
      %p139 = por %p137, %p138
      %p140 = scmp.ne.s32.totalorder %s131, %s132
      %p141 = scmp.eq.s32.totalorder %s37, 0
      %p142 = por %p140, %p141
      %p143 = scmp.ne.s32.totalorder %s131, %s132
      %p144 = scmp.eq.s32.totalorder %s38, 1
      %p145 = por %p143, %p144
      %p147 = scmp.ne.s32.totalorder %s132, %s146
      %p148 = scmp.eq.s32.totalorder %s38, 0
      %p149 = por %p147, %p148
      %s151 = sadd.s32 %s150, 1
      %p154 = scmp.eq.s32.totalorder %s32, 1
      %p155 = scmp.ne.s32.totalorder %s150, %s152
      %p156 = scmp.eq.s32.totalorder %s32, 0
      %p157 = por %p155, %p156
      %p158 = scmp.ne.s32.totalorder %s150, %s152
      %p159 = scmp.eq.s32.totalorder %s37, 1
      %p160 = por %p158, %p159
      %p161 = scmp.ne.s32.totalorder %s152, %s153
      %p162 = scmp.eq.s32.totalorder %s37, 0
      %p163 = por %p161, %p162
      %p164 = scmp.ne.s32.totalorder %s152, %s153
      %p165 = scmp.eq.s32.totalorder %s38, 1
      %p166 = por %p164, %p165
      %p168 = scmp.ne.s32.totalorder %s153, %s167
      %p169 = scmp.eq.s32.totalorder %s38, 0
      %p170 = por %p168, %p169
      %s172 = sadd.s32 %s171, 1
      %p175 = scmp.eq.s32.totalorder %s32, 1
      %p176 = scmp.ne.s32.totalorder %s171, %s173
      %p177 = scmp.eq.s32.totalorder %s32, 0
      %p178 = por %p176, %p177
      %p179 = scmp.ne.s32.totalorder %s171, %s173
      %p180 = scmp.eq.s32.totalorder %s37, 1
      %p181 = por %p179, %p180
      %p182 = scmp.ne.s32.totalorder %s173, %s174
      %p183 = scmp.eq.s32.totalorder %s37, 0
      %p184 = por %p182, %p183
      %p185 = scmp.ne.s32.totalorder %s173, %s174
      %p186 = scmp.eq.s32.totalorder %s38, 1
      %p187 = por %p185, %p186
      %p189 = scmp.ne.s32.totalorder %s174, %s188
      %p190 = scmp.eq.s32.totalorder %s38, 0
      %p191 = por %p189, %p190
      %s193 = sadd.s32 %s192, 1
      %p196 = scmp.eq.s32.totalorder %s32, 1
      %p197 = scmp.ne.s32.totalorder %s192, %s194
      %p198 = scmp.eq.s32.totalorder %s32, 0
      %p199 = por %p197, %p198
      %p200 = scmp.ne.s32.totalorder %s192, %s194
      %p201 = scmp.eq.s32.totalorder %s37, 1
      %p202 = por %p200, %p201
      %p203 = scmp.ne.s32.totalorder %s194, %s195
      %p204 = scmp.eq.s32.totalorder %s37, 0
      %p205 = por %p203, %p204
      %p206 = scmp.ne.s32.totalorder %s194, %s195
      %p207 = scmp.eq.s32.totalorder %s38, 1
      %p208 = por %p206, %p207
      %p210 = scmp.ne.s32.totalorder %s195, %s209
      %p211 = scmp.eq.s32.totalorder %s38, 0
      %p212 = por %p210, %p211
      %s214 = sadd.s32 %s213, 1
      %p217 = scmp.eq.s32.totalorder %s32, 1
      %p218 = scmp.ne.s32.totalorder %s213, %s215
      %p219 = scmp.eq.s32.totalorder %s32, 0
      %p220 = por %p218, %p219
      %p221 = scmp.ne.s32.totalorder %s213, %s215
      %p222 = scmp.eq.s32.totalorder %s37, 1
      %p223 = por %p221, %p222
      %p224 = scmp.ne.s32.totalorder %s215, %s216
      %p225 = scmp.eq.s32.totalorder %s37, 0
      %p226 = por %p224, %p225
      %p227 = scmp.ne.s32.totalorder %s215, %s216
      %p228 = scmp.eq.s32.totalorder %s38, 1
      %p229 = por %p227, %p228
      %p231 = scmp.ne.s32.totalorder %s216, %s230
      %p232 = scmp.eq.s32.totalorder %s38, 0
      %p233 = por %p231, %p232
      %s235 = sadd.s32 %s234, 1
      %p238 = scmp.eq.s32.totalorder %s32, 1
      %p239 = scmp.ne.s32.totalorder %s234, %s236
      %p240 = scmp.eq.s32.totalorder %s32, 0
      %p241 = por %p239, %p240
      %p242 = scmp.ne.s32.totalorder %s234, %s236
      %p243 = scmp.eq.s32.totalorder %s37, 1
      %p244 = por %p242, %p243
      %p245 = scmp.ne.s32.totalorder %s236, %s237
      %p246 = scmp.eq.s32.totalorder %s37, 0
      %p247 = por %p245, %p246
      %p248 = scmp.ne.s32.totalorder %s236, %s237
      %p249 = scmp.eq.s32.totalorder %s38, 1
      %p250 = por %p248, %p249
      %p252 = scmp.ne.s32.totalorder %s237, %s251
      %p253 = scmp.eq.s32.totalorder %s38, 0
      %p254 = por %p252, %p253
      %s256 = sadd.s32 %s255, 1
      %p259 = scmp.eq.s32.totalorder %s32, 1
      %p260 = scmp.ne.s32.totalorder %s255, %s257
      %p261 = scmp.eq.s32.totalorder %s32, 0
      %p262 = por %p260, %p261
      %p263 = scmp.ne.s32.totalorder %s255, %s257
      %p264 = scmp.eq.s32.totalorder %s37, 1
      %p265 = por %p263, %p264
      %p266 = scmp.ne.s32.totalorder %s257, %s258
      %p267 = scmp.eq.s32.totalorder %s37, 0
      %p268 = por %p266, %p267
      %p269 = scmp.ne.s32.totalorder %s257, %s258
      %p270 = scmp.eq.s32.totalorder %s38, 1
      %p271 = por %p269, %p270
      %p273 = scmp.ne.s32.totalorder %s258, %s272
      %p274 = scmp.eq.s32.totalorder %s38, 0
      %p275 = por %p273, %p274
      %s277 = sadd.s32 %s276, 1
      %p280 = scmp.eq.s32.totalorder %s32, 1
      %p281 = scmp.ne.s32.totalorder %s276, %s278
      %p282 = scmp.eq.s32.totalorder %s32, 0
      %p283 = por %p281, %p282
      %p284 = scmp.ne.s32.totalorder %s276, %s278
      %p285 = scmp.eq.s32.totalorder %s37, 1
      %p286 = por %p284, %p285
      %p287 = scmp.ne.s32.totalorder %s278, %s279
      %p288 = scmp.eq.s32.totalorder %s37, 0
      %p289 = por %p287, %p288
      %p290 = scmp.ne.s32.totalorder %s278, %s279
      %p291 = scmp.eq.s32.totalorder %s38, 1
      %p292 = por %p290, %p291
      %p294 = scmp.ne.s32.totalorder %s279, %s293
      %p295 = scmp.eq.s32.totalorder %s38, 0
      %p296 = por %p294, %p295
      %s298 = sadd.s32 %s297, 1
      %p301 = scmp.eq.s32.totalorder %s32, 1
      %p302 = scmp.ne.s32.totalorder %s297, %s299
      %p303 = scmp.eq.s32.totalorder %s32, 0
      %p304 = por %p302, %p303
      %p305 = scmp.ne.s32.totalorder %s297, %s299
      %p306 = scmp.eq.s32.totalorder %s37, 1
      %p307 = por %p305, %p306
      %p308 = scmp.ne.s32.totalorder %s299, %s300
      %p309 = scmp.eq.s32.totalorder %s37, 0
      %p310 = por %p308, %p309
      %p311 = scmp.ne.s32.totalorder %s299, %s300
      %p312 = scmp.eq.s32.totalorder %s38, 1
      %p313 = por %p311, %p312
      %p315 = scmp.ne.s32.totalorder %s300, %s314
      %p316 = scmp.eq.s32.totalorder %s38, 0
      %p317 = por %p315, %p316
      %s319 = sadd.s32 %s318, 1
      %p322 = scmp.eq.s32.totalorder %s32, 1
      %p323 = scmp.ne.s32.totalorder %s318, %s320
      %p324 = scmp.eq.s32.totalorder %s32, 0
      %p325 = por %p323, %p324
      %p326 = scmp.ne.s32.totalorder %s318, %s320
      %p327 = scmp.eq.s32.totalorder %s37, 1
      %p328 = por %p326, %p327
      %p329 = scmp.ne.s32.totalorder %s320, %s321
      %p330 = scmp.eq.s32.totalorder %s37, 0
      %p331 = por %p329, %p330
      %p332 = scmp.ne.s32.totalorder %s320, %s321
      %p333 = scmp.eq.s32.totalorder %s38, 1
      %p334 = por %p332, %p333
      %p336 = scmp.ne.s32.totalorder %s321, %s335
      %p337 = scmp.eq.s32.totalorder %s38, 0
      %p338 = por %p336, %p337
      %s340 = sadd.s32 %s339, 1
      %p343 = scmp.eq.s32.totalorder %s32, 1
      %p344 = scmp.ne.s32.totalorder %s339, %s341
      %p345 = scmp.eq.s32.totalorder %s32, 0
      %p346 = por %p344, %p345
      %p347 = scmp.ne.s32.totalorder %s339, %s341
      %p348 = scmp.eq.s32.totalorder %s37, 1
      %p349 = por %p347, %p348
      %p350 = scmp.ne.s32.totalorder %s341, %s342
      %p351 = scmp.eq.s32.totalorder %s37, 0
      %p352 = por %p350, %p351
      %p353 = scmp.ne.s32.totalorder %s341, %s342
      %p354 = scmp.eq.s32.totalorder %s38, 1
      %p355 = por %p353, %p354
      %p357 = scmp.ne.s32.totalorder %s342, %s356
      %p358 = scmp.eq.s32.totalorder %s38, 0
      %p359 = por %p357, %p358
      %s361 = sadd.s32 %s360, 1
      %p364 = scmp.eq.s32.totalorder %s32, 1
      %p365 = scmp.ne.s32.totalorder %s360, %s362
      %p366 = scmp.eq.s32.totalorder %s32, 0
      %p367 = por %p365, %p366
      %p368 = scmp.ne.s32.totalorder %s360, %s362
      %p369 = scmp.eq.s32.totalorder %s37, 1
      %p370 = por %p368, %p369
      %p371 = scmp.ne.s32.totalorder %s362, %s363
      %p372 = scmp.eq.s32.totalorder %s37, 0
      %p373 = por %p371, %p372
      %p374 = scmp.ne.s32.totalorder %s362, %s363
      %p375 = scmp.eq.s32.totalorder %s38, 1
      %p376 = por %p374, %p375
      %p378 = scmp.ne.s32.totalorder %s363, %s377
      %p379 = scmp.eq.s32.totalorder %s38, 0
      %p380 = por %p378, %p379
      %s382 = sadd.s32 %s381, 1
      %p385 = scmp.eq.s32.totalorder %s32, 1
      %p386 = scmp.ne.s32.totalorder %s381, %s383
      %p387 = scmp.eq.s32.totalorder %s32, 0
      %p388 = por %p386, %p387
      %p389 = scmp.ne.s32.totalorder %s381, %s383
      %p390 = scmp.eq.s32.totalorder %s37, 1
      %p391 = por %p389, %p390
      %p392 = scmp.ne.s32.totalorder %s383, %s384
      %p393 = scmp.eq.s32.totalorder %s37, 0
      %p394 = por %p392, %p393
      %p395 = scmp.ne.s32.totalorder %s383, %s384
      %p396 = scmp.eq.s32.totalorder %s38, 1
      %p397 = por %p395, %p396
      %p399 = scmp.ne.s32.totalorder %s384, %s398
      %p400 = scmp.eq.s32.totalorder %s38, 0
      %p401 = por %p399, %p400
      %s403 = sadd.s32 %s402, 1
      %p406 = scmp.eq.s32.totalorder %s32, 1
      %p407 = scmp.ne.s32.totalorder %s402, %s404
      %p408 = scmp.eq.s32.totalorder %s32, 0
      %p409 = por %p407, %p408
      %p410 = scmp.ne.s32.totalorder %s402, %s404
      %p411 = scmp.eq.s32.totalorder %s37, 1
      %p412 = por %p410, %p411
      %p413 = scmp.ne.s32.totalorder %s404, %s405
      %p414 = scmp.eq.s32.totalorder %s37, 0
      %p415 = por %p413, %p414
      %p416 = scmp.ne.s32.totalorder %s404, %s405
      %p417 = scmp.eq.s32.totalorder %s38, 1
      %p418 = por %p416, %p417
      %p420 = scmp.ne.s32.totalorder %s405, %s419
      %p421 = scmp.eq.s32.totalorder %s38, 0
      %p422 = por %p420, %p421
      %s424 = sadd.s32 %s423, 1
      %p427 = scmp.eq.s32.totalorder %s32, 1
      %p428 = scmp.ne.s32.totalorder %s423, %s425
      %p429 = scmp.eq.s32.totalorder %s32, 0
      %p430 = por %p428, %p429
      %p431 = scmp.ne.s32.totalorder %s423, %s425
      %p432 = scmp.eq.s32.totalorder %s37, 1
      %p433 = por %p431, %p432
      %p434 = scmp.ne.s32.totalorder %s425, %s426
      %p435 = scmp.eq.s32.totalorder %s37, 0
      %p436 = por %p434, %p435
      %p437 = scmp.ne.s32.totalorder %s425, %s426
      %p438 = scmp.eq.s32.totalorder %s38, 1
      %p439 = por %p437, %p438
      %p441 = scmp.ne.s32.totalorder %s426, %s440
      %p442 = scmp.eq.s32.totalorder %s38, 0
      %p443 = por %p441, %p442
      %s444 = ssub.s32 %s32, %s39
      %p445 = scmp.eq.s32.totalorder %s444, 0
      %s447 = sadd.s32 %s446, 1
      %s448 = scalar_select %p445, %s446, %s447
      %p451 = pneg %p445
      %p452 = scmp.eq.s32.totalorder %s32, 1
      %p453 = por %p451, %p452
      %p454 = scmp.ne.s32.totalorder %s446, %s449
      %p455 = scmp.eq.s32.totalorder %s32, 0
      %p456 = por %p454, %p455
      %p457 = scmp.ne.s32.totalorder %s446, %s449
      %p458 = scmp.eq.s32.totalorder %s37, 1
      %p459 = por %p457, %p458
      %p460 = scmp.ne.s32.totalorder %s449, %s450
      %p461 = scmp.eq.s32.totalorder %s37, 0
      %p462 = por %p460, %p461
      %p463 = scmp.ne.s32.totalorder %s449, %s450
      %p464 = scmp.eq.s32.totalorder %s38, 1
      %p465 = por %p463, %p464
      %p467 = scmp.ne.s32.totalorder %s450, %s466
      %p468 = scmp.eq.s32.totalorder %s38, 0
      %p469 = por %p467, %p468
      %p470 = scmp.le.s32.totalorder 1, %s32
      %p471 = scmp.lt.s32.totalorder %s32, 3
      %p472 = pnand %p470, %p471
      %p473 = pneg %p472
      // Predicated region
      $region9: #{tpu_custom_call.1} parent=5 // pred_check
        _
      $region10: #{tpu_custom_call.1} parent=5 // pred_check_branch
        %475 = sbr.rel (%p472) target = $region12
      $region11: #{tpu_custom_call.1} parent=5 // pred_region
        %s476 = ssub.s32 %s32, 1
        // Predicated region
        $region13: #{tpu_custom_call.1} parent=11 // pred_check
          %p477 = pneg %p79
        $region14: #{tpu_custom_call.1} parent=11 // pred_check_branch
          %479 = sbr.rel (%p477) target = $region16
        $region15: #{tpu_custom_call.1} parent=11 // pred_region
          _
        $region16: #{tpu_custom_call.1} parent=11 // pred_fallthru
          _
        // Predicated region
        $region17: #{tpu_custom_call.1} parent=11 // pred_check
          %p480 = pneg %p100
        $region18: #{tpu_custom_call.1} parent=11 // pred_check_branch
          %482 = sbr.rel (%p480) target = $region20
        $region19: #{tpu_custom_call.1} parent=11 // pred_region
          %484 = vsyncadd [#allocation4], 0
          %s486 = sshll.u32 %s2, 4
          %s487 = int_to_ptr.hbm [resolvable:$true] %s486
          %s488 = sshll.u32 [#allocation3], 4
          %s489 = int_to_ptr.vmem [resolvable:$true] %s488
          %491 = dma.hbm_to_vmem [thread:$0]  %s487, 16, %s489, [#allocation4]
        $region20: #{tpu_custom_call.1} parent=11 // pred_fallthru
          _
        // Predicated region
        $region21: #{tpu_custom_call.1} parent=11 // pred_check
          %p492 = pneg %p121
        $region22: #{tpu_custom_call.1} parent=11 // pred_check_branch
          %494 = sbr.rel (%p492) target = $region24
        $region23: #{tpu_custom_call.1} parent=11 // pred_region
          %496 = vsyncadd [#allocation7], 0
          %s498 = sshll.u32 %s3, 4
          %s499 = int_to_ptr.hbm [resolvable:$true] %s498
          %s500 = sshll.u32 [#allocation6], 4
          %s501 = int_to_ptr.vmem [resolvable:$true] %s500
          %503 = dma.hbm_to_vmem [thread:$0]  %s499, 16, %s501, [#allocation7]
        $region24: #{tpu_custom_call.1} parent=11 // pred_fallthru
          _
        // Predicated region
        $region25: #{tpu_custom_call.1} parent=11 // pred_check
          %p504 = pneg %p142
        $region26: #{tpu_custom_call.1} parent=11 // pred_check_branch
          %506 = sbr.rel (%p504) target = $region28
        $region27: #{tpu_custom_call.1} parent=11 // pred_region
          %508 = vsyncadd [#allocation7], 0
          %s510 = sshll.u32 %s4, 4
          %s511 = int_to_ptr.hbm [resolvable:$true] %s510
          %s512 = sshll.u32 [#allocation8], 4
          %s513 = int_to_ptr.vmem [resolvable:$true] %s512
          %515 = dma.hbm_to_vmem [thread:$0]  %s511, 16, %s513, [#allocation7]
        $region28: #{tpu_custom_call.1} parent=11 // pred_fallthru
          _
        // Predicated region
        $region29: #{tpu_custom_call.1} parent=11 // pred_check
          %p516 = pneg %p163
        $region30: #{tpu_custom_call.1} parent=11 // pred_check_branch
          %518 = sbr.rel (%p516) target = $region32
        $region31: #{tpu_custom_call.1} parent=11 // pred_region
          _
        $region32: #{tpu_custom_call.1} parent=11 // pred_fallthru
          _
        // Predicated region
        $region33: #{tpu_custom_call.1} parent=11 // pred_check
          %p519 = pneg %p184
        $region34: #{tpu_custom_call.1} parent=11 // pred_check_branch
          %521 = sbr.rel (%p519) target = $region36
        $region35: #{tpu_custom_call.1} parent=11 // pred_region
          _
        $region36: #{tpu_custom_call.1} parent=11 // pred_fallthru
          _
        // Predicated region
        $region37: #{tpu_custom_call.1} parent=11 // pred_check
          %p522 = pneg %p205
        $region38: #{tpu_custom_call.1} parent=11 // pred_check_branch
          %524 = sbr.rel (%p522) target = $region40
        $region39: #{tpu_custom_call.1} parent=11 // pred_region
          _
        $region40: #{tpu_custom_call.1} parent=11 // pred_fallthru
          _
        // Predicated region
        $region41: #{tpu_custom_call.1} parent=11 // pred_check
          %p525 = pneg %p226
        $region42: #{tpu_custom_call.1} parent=11 // pred_check_branch
          %527 = sbr.rel (%p525) target = $region44
        $region43: #{tpu_custom_call.1} parent=11 // pred_region
          _
        $region44: #{tpu_custom_call.1} parent=11 // pred_fallthru
          _
        // Predicated region
        $region45: #{tpu_custom_call.1} parent=11 // pred_check
          %p528 = pneg %p247
        $region46: #{tpu_custom_call.1} parent=11 // pred_check_branch
          %530 = sbr.rel (%p528) target = $region48
        $region47: #{tpu_custom_call.1} parent=11 // pred_region
          %532 = vsyncadd [#allocation10], 0
          %s534 = sshll.u32 %s9, 4
          %s535 = int_to_ptr.hbm [resolvable:$true] %s534
          %s536 = sshll.u32 [#allocation9], 4
          %s537 = int_to_ptr.vmem [resolvable:$true] %s536
          %539 = dma.hbm_to_vmem [thread:$0]  %s535, 16, %s537, [#allocation10]
        $region48: #{tpu_custom_call.1} parent=11 // pred_fallthru
          _
        // Predicated region
        $region49: #{tpu_custom_call.1} parent=11 // pred_check
          %p540 = pneg %p268
        $region50: #{tpu_custom_call.1} parent=11 // pred_check_branch
          %542 = sbr.rel (%p540) target = $region52
        $region51: #{tpu_custom_call.1} parent=11 // pred_region
          _
        $region52: #{tpu_custom_call.1} parent=11 // pred_fallthru
          _
        // Predicated region
        $region53: #{tpu_custom_call.1} parent=11 // pred_check
          %p543 = pneg %p289
        $region54: #{tpu_custom_call.1} parent=11 // pred_check_branch
          %545 = sbr.rel (%p543) target = $region56
        $region55: #{tpu_custom_call.1} parent=11 // pred_region
          _
        $region56: #{tpu_custom_call.1} parent=11 // pred_fallthru
          _
        // Predicated region
        $region57: #{tpu_custom_call.1} parent=11 // pred_check
          %p546 = pneg %p310
        $region58: #{tpu_custom_call.1} parent=11 // pred_check_branch
          %548 = sbr.rel (%p546) target = $region60
        $region59: #{tpu_custom_call.1} parent=11 // pred_region
          %550 = vsyncadd [#allocation10], 0
          %s551 = sshll.u32 %s12, 4
          %s552 = int_to_ptr.hbm [resolvable:$true] %s551
          %s553 = sshll.u32 [#allocation11], 4
          %s554 = int_to_ptr.vmem [resolvable:$true] %s553
          %559 = dma.hbm_to_vmem [thread:$0]  %s552, 512, %s554, [#allocation10], 128, 128, 8
        $region60: #{tpu_custom_call.1} parent=11 // pred_fallthru
          _
        // Predicated region
        $region61: #{tpu_custom_call.1} parent=11 // pred_check
          %p560 = pneg %p331
        $region62: #{tpu_custom_call.1} parent=11 // pred_check_branch
          %562 = sbr.rel (%p560) target = $region64
        $region63: #{tpu_custom_call.1} parent=11 // pred_region
          %564 = vsyncadd [#allocation13], 0
          %s565 = sshll.u32 %s13, 4
          %s566 = int_to_ptr.hbm [resolvable:$true] %s565
          %s567 = sshll.u32 [#allocation12], 4
          %s568 = int_to_ptr.vmem [resolvable:$true] %s567
          %573 = dma.hbm_to_vmem [thread:$0]  %s566, 2048, %s568, [#allocation13], 128, 128, 8
        $region64: #{tpu_custom_call.1} parent=11 // pred_fallthru
          _
        // Predicated region
        $region65: #{tpu_custom_call.1} parent=11 // pred_check
          %p574 = pneg %p352
        $region66: #{tpu_custom_call.1} parent=11 // pred_check_branch
          %576 = sbr.rel (%p574) target = $region68
        $region67: #{tpu_custom_call.1} parent=11 // pred_region
          _
        $region68: #{tpu_custom_call.1} parent=11 // pred_fallthru
          _
        // Predicated region
        $region69: #{tpu_custom_call.1} parent=11 // pred_check
          %p577 = pneg %p373
        $region70: #{tpu_custom_call.1} parent=11 // pred_check_branch
          %579 = sbr.rel (%p577) target = $region72
        $region71: #{tpu_custom_call.1} parent=11 // pred_region
          _
        $region72: #{tpu_custom_call.1} parent=11 // pred_fallthru
          _
        // Predicated region
        $region73: #{tpu_custom_call.1} parent=11 // pred_check
          %p580 = pneg %p394
        $region74: #{tpu_custom_call.1} parent=11 // pred_check_branch
          %582 = sbr.rel (%p580) target = $region76
        $region75: #{tpu_custom_call.1} parent=11 // pred_region
          _
        $region76: #{tpu_custom_call.1} parent=11 // pred_fallthru
          _
        // Predicated region
        $region77: #{tpu_custom_call.1} parent=11 // pred_check
          %p583 = pneg %p415
        $region78: #{tpu_custom_call.1} parent=11 // pred_check_branch
          %585 = sbr.rel (%p583) target = $region80
        $region79: #{tpu_custom_call.1} parent=11 // pred_region
          %587 = vsyncadd [#allocation13], 0
          %s588 = sshll.u32 %s17, 4
          %s589 = int_to_ptr.hbm [resolvable:$true] %s588
          %s590 = sshll.u32 [#allocation14], 4
          %s591 = int_to_ptr.vmem [resolvable:$true] %s590
          %596 = dma.hbm_to_vmem [thread:$0]  %s589, 4096, %s591, [#allocation13], 128, 128, 8
        $region80: #{tpu_custom_call.1} parent=11 // pred_fallthru
          _
        // Predicated region
        $region81: #{tpu_custom_call.1} parent=11 // pred_check
          %p597 = pneg %p436
        $region82: #{tpu_custom_call.1} parent=11 // pred_check_branch
          %599 = sbr.rel (%p597) target = $region84
        $region83: #{tpu_custom_call.1} parent=11 // pred_region
          _
        $region84: #{tpu_custom_call.1} parent=11 // pred_fallthru
          _
      $region12: #{tpu_custom_call.1} parent=5 // pred_fallthru
        _
      %p600 = scmp.lt.s32.totalorder %s32, 2
      // Predicated region
      $region85: #{tpu_custom_call.1} parent=5 // pred_check
        %p601 = pneg %p600
      $region86: #{tpu_custom_call.1} parent=5 // pred_check_branch
        %603 = sbr.rel (%p601) target = $region88
      $region87: #{tpu_custom_call.1} parent=5 // pred_region
        // Predicated region
        $region89: #{tpu_custom_call.1} parent=87 // pred_check
          %p604 = pneg %p52
        $region90: #{tpu_custom_call.1} parent=87 // pred_check_branch
          %606 = sbr.rel (%p604) target = $region92
        $region91: #{tpu_custom_call.1} parent=87 // pred_region
          %p607 = scmp.lt.s32.totalorder %s32, 1
          %s608 = scalar_select %p607, %s32, 1
          %s609 = smul.addr %s608, 8
          %s610 = smul.addr %s609, 8
          %s611 = scalar_lea.vmem %s0, %s610
        $region92: #{tpu_custom_call.1} parent=87 // pred_fallthru
          _
      $region88: #{tpu_custom_call.1} parent=5 // pred_fallthru
        _
      %p612 = scmp.le.s32.totalorder 1, %s32
      %p613 = scmp.lt.s32.totalorder %s32, 3
      %p614 = pnand %p612, %p613
      %p615 = pneg %p614
      // Predicated region
      $region93: #{tpu_custom_call.1} parent=5 // pred_check
        _
      $region94: #{tpu_custom_call.1} parent=5 // pred_check_branch
        %617 = sbr.rel (%p614) target = $region96
      $region95: #{tpu_custom_call.1} parent=5 // pred_region
        %s618 = ssub.s32 %s32, 1
        // Predicated region
        $region97: #{tpu_custom_call.1} parent=95 // pred_check
          %p619 = pneg %p100
        $region98: #{tpu_custom_call.1} parent=95 // pred_check_branch
          %621 = sbr.rel (%p619) target = $region100
        $region99: #{tpu_custom_call.1} parent=95 // pred_region
          %623 = dma.done [#allocation4], 16
        $region100: #{tpu_custom_call.1} parent=95 // pred_fallthru
          _
        // Predicated region
        $region101: #{tpu_custom_call.1} parent=95 // pred_check
          %p624 = pneg %p121
        $region102: #{tpu_custom_call.1} parent=95 // pred_check_branch
          %626 = sbr.rel (%p624) target = $region104
        $region103: #{tpu_custom_call.1} parent=95 // pred_region
          %628 = dma.done [#allocation7], 16
        $region104: #{tpu_custom_call.1} parent=95 // pred_fallthru
          _
        // Predicated region
        $region105: #{tpu_custom_call.1} parent=95 // pred_check
          %p629 = pneg %p142
        $region106: #{tpu_custom_call.1} parent=95 // pred_check_branch
          %631 = sbr.rel (%p629) target = $region108
        $region107: #{tpu_custom_call.1} parent=95 // pred_region
          %633 = dma.done [#allocation7], 16
        $region108: #{tpu_custom_call.1} parent=95 // pred_fallthru
          _
        // Predicated region
        $region109: #{tpu_custom_call.1} parent=95 // pred_check
          %p634 = pneg %p247
        $region110: #{tpu_custom_call.1} parent=95 // pred_check_branch
          %636 = sbr.rel (%p634) target = $region112
        $region111: #{tpu_custom_call.1} parent=95 // pred_region
          %638 = dma.done [#allocation10], 16
        $region112: #{tpu_custom_call.1} parent=95 // pred_fallthru
          _
        // Predicated region
        $region113: #{tpu_custom_call.1} parent=95 // pred_check
          %p639 = pneg %p310
        $region114: #{tpu_custom_call.1} parent=95 // pred_check_branch
          %641 = sbr.rel (%p639) target = $region116
        $region115: #{tpu_custom_call.1} parent=95 // pred_region
          %643 = dma.done [#allocation10], 512
        $region116: #{tpu_custom_call.1} parent=95 // pred_fallthru
          _
        // Predicated region
        $region117: #{tpu_custom_call.1} parent=95 // pred_check
          %p644 = pneg %p331
        $region118: #{tpu_custom_call.1} parent=95 // pred_check_branch
          %646 = sbr.rel (%p644) target = $region120
        $region119: #{tpu_custom_call.1} parent=95 // pred_region
          %648 = dma.done [#allocation13], 2048
        $region120: #{tpu_custom_call.1} parent=95 // pred_fallthru
          _
        // Predicated region
        $region121: #{tpu_custom_call.1} parent=95 // pred_check
          %p649 = pneg %p415
        $region122: #{tpu_custom_call.1} parent=95 // pred_check_branch
          %651 = sbr.rel (%p649) target = $region124
        $region123: #{tpu_custom_call.1} parent=95 // pred_region
          %653 = dma.done [#allocation13], 4096
        $region124: #{tpu_custom_call.1} parent=95 // pred_fallthru
          _
        %p654 = scmp.lt.s32.totalorder %s37, 1
        %s655 = scalar_select %p654, %s37, 1
        %s656 = smul.addr %s655, 8
        %s657 = smul.addr %s656, 8
        %s658 = scalar_lea.vmem %s0, %s657
        %p659 = pneg %p58
        %p660 = pneg %p55
        %p661 = pneg %p79
        %p662 = pneg %p76
        %p663 = pneg %p100
        %p664 = pneg %p97
        %p665 = pneg %p121
        %p666 = pneg %p118
        %p667 = pneg %p142
        %p668 = pneg %p139
        %p669 = pneg %p163
        %p670 = pneg %p160
        %p671 = pneg %p184
        %p672 = pneg %p181
        %p673 = pneg %p205
        %p674 = pneg %p202
        %p675 = pneg %p226
        %p676 = pneg %p223
        %p677 = pneg %p247
        %p678 = pneg %p244
        %p679 = pneg %p268
        %p680 = pneg %p265
        %p681 = pneg %p289
        %p682 = pneg %p286
        %p683 = pneg %p310
        %p684 = pneg %p307
        %p685 = pneg %p331
        %p686 = pneg %p328
        %p687 = pneg %p352
        %p688 = pneg %p349
        %p689 = pneg %p373
        %p690 = pneg %p370
        %p691 = pneg %p394
        %p692 = pneg %p391
        %p693 = pneg %p415
        %p694 = pneg %p412
        %p695 = pneg %p436
        %p696 = pneg %p433
        %p697 = pneg %p462
        %p698 = pneg %p459
        %s699 = sand.u32 %s449, 1
        %s700 = scalar_lea.sflag [#allocation5], %s699
        %s701 = sand.u32 %s449, 1
        %s702 = smul.addr %s701, 64
        %s703 = scalar_lea.vmem [#allocation15], %s702
        %p704 = scmp.lt.s32.totalorder %s37, 1
        %s705 = scalar_select %p704, %s37, 1
        %s706 = smul.addr %s705, 8
        %s707 = smul.addr %s706, 8
        %s708 = scalar_lea.vmem %s0, %s707
        %v709 = vld [vmem:[%s708] sm:$0xff]
        %v710 = vld [vmem:[%s708 + $0x8] sm:$0xff]
        %v711 = vld [vmem:[%s708 + $0x10] sm:$0xff]
        %v712 = vld [vmem:[%s708 + $0x18] sm:$0xff]
        %v713 = vld [vmem:[%s708 + $0x20] sm:$0xff]
        %v714 = vld [vmem:[%s708 + $0x28] sm:$0xff]
        %v715 = vld [vmem:[%s708 + $0x30] sm:$0xff]
        %v716 = vld [vmem:[%s708 + $0x38] sm:$0xff]
        %717 = vst [vmem:[#allocation2] sm:$0xff] 0.0
        %718 = vst [vmem:[#allocation2 + $0x8] sm:$0x3] 0.0
        %719 = vst [vmem:[#allocation2 + $0x10] sm:$0xff] 0.0
        %720 = vst [vmem:[#allocation2 + $0x18] sm:$0x3] 0.0
        %721 = vst [vmem:[#allocation2 + $0x20] sm:$0xff] 0.0
        %722 = vst [vmem:[#allocation2 + $0x28] sm:$0x3] 0.0
        %723 = vst [vmem:[#allocation2 + $0x30] sm:$0xff] 0.0
        %724 = vst [vmem:[#allocation2 + $0x38] sm:$0x3] 0.0
        %725 = vst [vmem:[#allocation2 + $0x40] sm:$0xff] 0.0
        %726 = vst [vmem:[#allocation2 + $0x48] sm:$0x3] 0.0
        %727 = vst [vmem:[#allocation2 + $0x50] sm:$0xff] 0.0
        %728 = vst [vmem:[#allocation2 + $0x58] sm:$0x3] 0.0
        %729 = vst [vmem:[#allocation2 + $0x60] sm:$0xff] 0.0
        %730 = vst [vmem:[#allocation2 + $0x68] sm:$0x3] 0.0
        %731 = vst [vmem:[#allocation2 + $0x70] sm:$0xff] 0.0
        %732 = vst [vmem:[#allocation2 + $0x78] sm:$0x3] 0.0
        %733 = vst [vmem:[#allocation2 + $0x80] sm:$0xff] 0.0
        %734 = vst [vmem:[#allocation2 + $0x88] sm:$0x3] 0.0
        %735 = vst [vmem:[#allocation2 + $0x90] sm:$0xff] 0.0
        %736 = vst [vmem:[#allocation2 + $0x98] sm:$0x3] 0.0
        %s737 = scalar_lea.vmem [#allocation2], 16
        %738 = vst [vmem:[%s737 + $0x1] sm:$0xff] %v709
        %739 = vst [vmem:[%s737 + $0x11] sm:$0xff] %v710
        %740 = vst [vmem:[%s737 + $0x21] sm:$0xff] %v711
        %741 = vst [vmem:[%s737 + $0x31] sm:$0xff] %v712
        %742 = vst [vmem:[%s737 + $0x41] sm:$0xff] %v713
        %743 = vst [vmem:[%s737 + $0x51] sm:$0xff] %v714
        %744 = vst [vmem:[%s737 + $0x61] sm:$0xff] %v715
        %745 = vst [vmem:[%s737 + $0x71] sm:$0xff] %v716
        %v746 = vld [vmem:[%s1] sm:$0xff]
        %v747 = vld [vmem:[%s1 + $0x8] sm:$0x1]
        %v748 = vld [vmem:[#allocation2] sm:$0xff]
        %v749 = vld [vmem:[#allocation2 + $0x10] sm:$0xff]
        %v750 = vld [vmem:[#allocation2 + $0x20] sm:$0xff]
        %v751 = vld [vmem:[#allocation2 + $0x30] sm:$0xff]
        %v752 = vld [vmem:[#allocation2 + $0x40] sm:$0xff]
        %v753 = vld [vmem:[#allocation2 + $0x50] sm:$0xff]
        %v754 = vld [vmem:[#allocation2 + $0x60] sm:$0xff]
        %v755 = vld [vmem:[#allocation2 + $0x70] sm:$0xff]
        %v756 = vperm.slane %v746, 0
        %v757 = vmul.f32 %v748, %v756
        %v758 = vmul.f32 %v749, %v756
        %v759 = vmul.f32 %v750, %v756
        %v760 = vmul.f32 %v751, %v756
        %v761 = vmul.f32 %v752, %v756
        %v762 = vmul.f32 %v753, %v756
        %v763 = vmul.f32 %v754, %v756
        %v764 = vmul.f32 %v755, %v756
        %v765 = vadd.f32 %v757, 0.0
        %v766 = vadd.f32 %v758, 0.0
        %v767 = vadd.f32 %v759, 0.0
        %v768 = vadd.f32 %v760, 0.0
        %v769 = vadd.f32 %v761, 0.0
        %v770 = vadd.f32 %v762, 0.0
        %v771 = vadd.f32 %v763, 0.0
        %v772 = vadd.f32 %v764, 0.0
        %v773 = vld [vmem:[#allocation2 + $0x1] sm:$0xff]
        %v774 = vld [vmem:[#allocation2 + $0x11] sm:$0xff]
        %v775 = vld [vmem:[#allocation2 + $0x21] sm:$0xff]
        %v776 = vld [vmem:[#allocation2 + $0x31] sm:$0xff]
        %v777 = vld [vmem:[#allocation2 + $0x41] sm:$0xff]
        %v778 = vld [vmem:[#allocation2 + $0x51] sm:$0xff]
        %v779 = vld [vmem:[#allocation2 + $0x61] sm:$0xff]
        %v780 = vld [vmem:[#allocation2 + $0x71] sm:$0xff]
        %v781 = vperm.slane %v746, 1
        %v782 = vmul.f32 %v773, %v781
        %v783 = vmul.f32 %v774, %v781
        %v784 = vmul.f32 %v775, %v781
        %v785 = vmul.f32 %v776, %v781
        %v786 = vmul.f32 %v777, %v781
        %v787 = vmul.f32 %v778, %v781
        %v788 = vmul.f32 %v779, %v781
        %v789 = vmul.f32 %v780, %v781
        %v790 = vadd.f32 %v765, %v782
        %v791 = vadd.f32 %v766, %v783
        %v792 = vadd.f32 %v767, %v784
        %v793 = vadd.f32 %v768, %v785
        %v794 = vadd.f32 %v769, %v786
        %v795 = vadd.f32 %v770, %v787
        %v796 = vadd.f32 %v771, %v788
        %v797 = vadd.f32 %v772, %v789
        %v798 = vld [vmem:[#allocation2 + $0x2] sm:$0xff]
        %v799 = vld [vmem:[#allocation2 + $0x12] sm:$0xff]
        %v800 = vld [vmem:[#allocation2 + $0x22] sm:$0xff]
        %v801 = vld [vmem:[#allocation2 + $0x32] sm:$0xff]
        %v802 = vld [vmem:[#allocation2 + $0x42] sm:$0xff]
        %v803 = vld [vmem:[#allocation2 + $0x52] sm:$0xff]
        %v804 = vld [vmem:[#allocation2 + $0x62] sm:$0xff]
        %v805 = vld [vmem:[#allocation2 + $0x72] sm:$0xff]
        %v806 = vperm.slane %v746, 2
        %v807 = vmul.f32 %v798, %v806
        %v808 = vmul.f32 %v799, %v806
        %v809 = vmul.f32 %v800, %v806
        %v810 = vmul.f32 %v801, %v806
        %v811 = vmul.f32 %v802, %v806
        %v812 = vmul.f32 %v803, %v806
        %v813 = vmul.f32 %v804, %v806
        %v814 = vmul.f32 %v805, %v806
        %v815 = vadd.f32 %v790, %v807
        %v816 = vadd.f32 %v791, %v808
        %v817 = vadd.f32 %v792, %v809
        %v818 = vadd.f32 %v793, %v810
        %v819 = vadd.f32 %v794, %v811
        %v820 = vadd.f32 %v795, %v812
        %v821 = vadd.f32 %v796, %v813
        %v822 = vadd.f32 %v797, %v814
        %v823 = vld [vmem:[%s737] sm:$0xff]
        %v824 = vld [vmem:[%s737 + $0x10] sm:$0xff]
        %v825 = vld [vmem:[%s737 + $0x20] sm:$0xff]
        %v826 = vld [vmem:[%s737 + $0x30] sm:$0xff]
        %v827 = vld [vmem:[%s737 + $0x40] sm:$0xff]
        %v828 = vld [vmem:[%s737 + $0x50] sm:$0xff]
        %v829 = vld [vmem:[%s737 + $0x60] sm:$0xff]
        %v830 = vld [vmem:[%s737 + $0x70] sm:$0xff]
        %v831 = vperm.slane %v746, 3
        %v832 = vmul.f32 %v823, %v831
        %v833 = vmul.f32 %v824, %v831
        %v834 = vmul.f32 %v825, %v831
        %v835 = vmul.f32 %v826, %v831
        %v836 = vmul.f32 %v827, %v831
        %v837 = vmul.f32 %v828, %v831
        %v838 = vmul.f32 %v829, %v831
        %v839 = vmul.f32 %v830, %v831
        %v840 = vadd.f32 %v815, %v832
        %v841 = vadd.f32 %v816, %v833
        %v842 = vadd.f32 %v817, %v834
        %v843 = vadd.f32 %v818, %v835
        %v844 = vadd.f32 %v819, %v836
        %v845 = vadd.f32 %v820, %v837
        %v846 = vadd.f32 %v821, %v838
        %v847 = vadd.f32 %v822, %v839
        %v848 = vld [vmem:[%s737 + $0x1] sm:$0xff]
        %v849 = vld [vmem:[%s737 + $0x11] sm:$0xff]
        %v850 = vld [vmem:[%s737 + $0x21] sm:$0xff]
        %v851 = vld [vmem:[%s737 + $0x31] sm:$0xff]
        %v852 = vld [vmem:[%s737 + $0x41] sm:$0xff]
        %v853 = vld [vmem:[%s737 + $0x51] sm:$0xff]
        %v854 = vld [vmem:[%s737 + $0x61] sm:$0xff]
        %v855 = vld [vmem:[%s737 + $0x71] sm:$0xff]
        %v856 = vperm.slane %v746, 4
        %v857 = vmul.f32 %v848, %v856
        %v858 = vmul.f32 %v849, %v856
        %v859 = vmul.f32 %v850, %v856
        %v860 = vmul.f32 %v851, %v856
        %v861 = vmul.f32 %v852, %v856
        %v862 = vmul.f32 %v853, %v856
        %v863 = vmul.f32 %v854, %v856
        %v864 = vmul.f32 %v855, %v856
        %v865 = vadd.f32 %v840, %v857
        %v866 = vadd.f32 %v841, %v858
        %v867 = vadd.f32 %v842, %v859
        %v868 = vadd.f32 %v843, %v860
        %v869 = vadd.f32 %v844, %v861
        %v870 = vadd.f32 %v845, %v862
        %v871 = vadd.f32 %v846, %v863
        %v872 = vadd.f32 %v847, %v864
        %v873 = vld [vmem:[%s737 + $0x2] sm:$0xff]
        %v874 = vld [vmem:[%s737 + $0x12] sm:$0xff]
        %v875 = vld [vmem:[%s737 + $0x22] sm:$0xff]
        %v876 = vld [vmem:[%s737 + $0x32] sm:$0xff]
        %v877 = vld [vmem:[%s737 + $0x42] sm:$0xff]
        %v878 = vld [vmem:[%s737 + $0x52] sm:$0xff]
        %v879 = vld [vmem:[%s737 + $0x62] sm:$0xff]
        %v880 = vld [vmem:[%s737 + $0x72] sm:$0xff]
        %v881 = vperm.slane %v746, 5
        %v882 = vmul.f32 %v873, %v881
        %v883 = vmul.f32 %v874, %v881
        %v884 = vmul.f32 %v875, %v881
        %v885 = vmul.f32 %v876, %v881
        %v886 = vmul.f32 %v877, %v881
        %v887 = vmul.f32 %v878, %v881
        %v888 = vmul.f32 %v879, %v881
        %v889 = vmul.f32 %v880, %v881
        %v890 = vadd.f32 %v865, %v882
        %v891 = vadd.f32 %v866, %v883
        %v892 = vadd.f32 %v867, %v884
        %v893 = vadd.f32 %v868, %v885
        %v894 = vadd.f32 %v869, %v886
        %v895 = vadd.f32 %v870, %v887
        %v896 = vadd.f32 %v871, %v888
        %v897 = vadd.f32 %v872, %v889
        %s898 = scalar_lea.vmem [#allocation2], 32
        %v899 = vld [vmem:[%s898] sm:$0xff]
        %v900 = vld [vmem:[%s898 + $0x10] sm:$0xff]
        %v901 = vld [vmem:[%s898 + $0x20] sm:$0xff]
        %v902 = vld [vmem:[%s898 + $0x30] sm:$0xff]
        %v903 = vld [vmem:[%s898 + $0x40] sm:$0xff]
        %v904 = vld [vmem:[%s898 + $0x50] sm:$0xff]
        %v905 = vld [vmem:[%s898 + $0x60] sm:$0xff]
        %v906 = vld [vmem:[%s898 + $0x70] sm:$0xff]
        %v907 = vperm.slane %v746, 6
        %v908 = vmul.f32 %v899, %v907
        %v909 = vmul.f32 %v900, %v907
        %v910 = vmul.f32 %v901, %v907
        %v911 = vmul.f32 %v902, %v907
        %v912 = vmul.f32 %v903, %v907
        %v913 = vmul.f32 %v904, %v907
        %v914 = vmul.f32 %v905, %v907
        %v915 = vmul.f32 %v906, %v907
        %v916 = vadd.f32 %v890, %v908
        %v917 = vadd.f32 %v891, %v909
        %v918 = vadd.f32 %v892, %v910
        %v919 = vadd.f32 %v893, %v911
        %v920 = vadd.f32 %v894, %v912
        %v921 = vadd.f32 %v895, %v913
        %v922 = vadd.f32 %v896, %v914
        %v923 = vadd.f32 %v897, %v915
        %v924 = vld [vmem:[%s898 + $0x1] sm:$0xff]
        %v925 = vld [vmem:[%s898 + $0x11] sm:$0xff]
        %v926 = vld [vmem:[%s898 + $0x21] sm:$0xff]
        %v927 = vld [vmem:[%s898 + $0x31] sm:$0xff]
        %v928 = vld [vmem:[%s898 + $0x41] sm:$0xff]
        %v929 = vld [vmem:[%s898 + $0x51] sm:$0xff]
        %v930 = vld [vmem:[%s898 + $0x61] sm:$0xff]
        %v931 = vld [vmem:[%s898 + $0x71] sm:$0xff]
        %v932 = vperm.slane %v746, 7
        %v933 = vmul.f32 %v924, %v932
        %v934 = vmul.f32 %v925, %v932
        %v935 = vmul.f32 %v926, %v932
        %v936 = vmul.f32 %v927, %v932
        %v937 = vmul.f32 %v928, %v932
        %v938 = vmul.f32 %v929, %v932
        %v939 = vmul.f32 %v930, %v932
        %v940 = vmul.f32 %v931, %v932
        %v941 = vadd.f32 %v916, %v933
        %v942 = vadd.f32 %v917, %v934
        %v943 = vadd.f32 %v918, %v935
        %v944 = vadd.f32 %v919, %v936
        %v945 = vadd.f32 %v920, %v937
        %v946 = vadd.f32 %v921, %v938
        %v947 = vadd.f32 %v922, %v939
        %v948 = vadd.f32 %v923, %v940
        %v949 = vld [vmem:[%s898 + $0x2] sm:$0xff]
        %v950 = vld [vmem:[%s898 + $0x12] sm:$0xff]
        %v951 = vld [vmem:[%s898 + $0x22] sm:$0xff]
        %v952 = vld [vmem:[%s898 + $0x32] sm:$0xff]
        %v953 = vld [vmem:[%s898 + $0x42] sm:$0xff]
        %v954 = vld [vmem:[%s898 + $0x52] sm:$0xff]
        %v955 = vld [vmem:[%s898 + $0x62] sm:$0xff]
        %v956 = vld [vmem:[%s898 + $0x72] sm:$0xff]
        %v957 = vperm.slane %v747, 0
        %v958 = vmul.f32 %v949, %v957
        %v959 = vmul.f32 %v950, %v957
        %v960 = vmul.f32 %v951, %v957
        %v961 = vmul.f32 %v952, %v957
        %v962 = vmul.f32 %v953, %v957
        %v963 = vmul.f32 %v954, %v957
        %v964 = vmul.f32 %v955, %v957
        %v965 = vmul.f32 %v956, %v957
        %v966 = vadd.f32 %v941, %v958
        %v967 = vadd.f32 %v942, %v959
        %v968 = vadd.f32 %v943, %v960
        %v969 = vadd.f32 %v944, %v961
        %v970 = vadd.f32 %v945, %v962
        %v971 = vadd.f32 %v946, %v963
        %v972 = vadd.f32 %v947, %v964
        %v973 = vadd.f32 %v948, %v965
        %v974 = vadd.f32 %v709, %v966
        %v975 = vadd.f32 %v710, %v967
        %v976 = vadd.f32 %v711, %v968
        %v977 = vadd.f32 %v712, %v969
        %v978 = vadd.f32 %v713, %v970
        %v979 = vadd.f32 %v714, %v971
        %v980 = vadd.f32 %v715, %v972
        %v981 = vadd.f32 %v716, %v973
        %v982 = vld [vmem:[#allocation3] sm:$0x1]
        %v984 = vperm.slane %v982, 0
        %v986 = vadd.f32 %v974, %v984
        %v987 = vadd.f32 %v975, %v984
        %v988 = vadd.f32 %v976, %v984
        %v989 = vadd.f32 %v977, %v984
        %v990 = vadd.f32 %v978, %v984
        %v991 = vadd.f32 %v979, %v984
        %v992 = vadd.f32 %v980, %v984
        %v993 = vadd.f32 %v981, %v984
        %v994 = vld [vmem:[#allocation6] sm:$0x1]
        %v996 = vperm.slane %v994, 0
        %v998 = vmul.f32 %v986, %v996
        %v999 = vmul.f32 %v987, %v996
        %v1000 = vmul.f32 %v988, %v996
        %v1001 = vmul.f32 %v989, %v996
        %v1002 = vmul.f32 %v990, %v996
        %v1003 = vmul.f32 %v991, %v996
        %v1004 = vmul.f32 %v992, %v996
        %v1005 = vmul.f32 %v993, %v996
        %v1006 = vadd.f32 %v998, %v999
        %v1007 = vadd.f32 %v1006, %v1000
        %v1008 = vadd.f32 %v1007, %v1001
        %v1009 = vadd.f32 %v1008, %v1002
        %v1010 = vadd.f32 %v1009, %v1003
        %v1011 = vadd.f32 %v1010, %v1004
        %v1012 = vadd.f32 %v1011, %v1005
        %1013 = vadd.xlane.f32.xlu0 %v1012
        %v1014 = vpop.xlane.xlu0 %1013
        %v1015 = vrot.slane %v1014, 4
        %v1016 = vadd.f32 %v1014, %v1015
        %v1017 = vrot.slane %v1016, 2
        %v1018 = vadd.f32 %v1016, %v1017
        %v1019 = vrot.slane %v1018, 1
        %v1020 = vadd.f32 %v1018, %v1019
        %s1021 = vtos %v1020
        %v1022 = vrcp.pop 2048.0
        %v1023 = vmul.f32 2048.0, %v1022
        %v1024 = vsub.f32 1.0, %v1023
        %v1025 = vmul.f32 %v1022, %v1024
        %v1026 = vadd.f32 %v1022, %v1025
        %vm1027 = vweird.f32 %v1022
        %v1028 = vsel %vm1027, %v1022, %v1026
        %s1029 = vtos %v1028
        %s1030 = smul.f32 %s1021, %s1029
        %v1031 = vstv %s1030
        %v1032 = vsub.f32 %v986, %v1031
        %v1033 = vsub.f32 %v987, %v1031
        %v1034 = vsub.f32 %v988, %v1031
        %v1035 = vsub.f32 %v989, %v1031
        %v1036 = vsub.f32 %v990, %v1031
        %v1037 = vsub.f32 %v991, %v1031
        %v1038 = vsub.f32 %v992, %v1031
        %v1039 = vsub.f32 %v993, %v1031
        %v1040 = vmul.f32 %v1032, %v1032
        %v1041 = vmul.f32 %v1033, %v1033
        %v1042 = vmul.f32 %v1034, %v1034
        %v1043 = vmul.f32 %v1035, %v1035
        %v1044 = vmul.f32 %v1036, %v1036
        %v1045 = vmul.f32 %v1037, %v1037
        %v1046 = vmul.f32 %v1038, %v1038
        %v1047 = vmul.f32 %v1039, %v1039
        %v1048 = vmul.f32 %v1040, %v996
        %v1049 = vmul.f32 %v1041, %v996
        %v1050 = vmul.f32 %v1042, %v996
        %v1051 = vmul.f32 %v1043, %v996
        %v1052 = vmul.f32 %v1044, %v996
        %v1053 = vmul.f32 %v1045, %v996
        %v1054 = vmul.f32 %v1046, %v996
        %v1055 = vmul.f32 %v1047, %v996
        %v1056 = vadd.f32 %v1048, %v1049
        %v1057 = vadd.f32 %v1056, %v1050
        %v1058 = vadd.f32 %v1057, %v1051
        %v1059 = vadd.f32 %v1058, %v1052
        %v1060 = vadd.f32 %v1059, %v1053
        %v1061 = vadd.f32 %v1060, %v1054
        %v1062 = vadd.f32 %v1061, %v1055
        %1063 = vadd.xlane.f32.xlu0 %v1062
        %v1064 = vpop.xlane.xlu0 %1063
        %v1065 = vrot.slane %v1064, 4
        %v1066 = vadd.f32 %v1064, %v1065
        %v1067 = vrot.slane %v1066, 2
        %v1068 = vadd.f32 %v1066, %v1067
        %v1069 = vrot.slane %v1068, 1
        %v1070 = vadd.f32 %v1068, %v1069
        %s1071 = vtos %v1070
        %v1072 = vrcp.pop 2048.0
        %v1073 = vmul.f32 2048.0, %v1072
        %v1074 = vsub.f32 1.0, %v1073
        %v1075 = vmul.f32 %v1072, %v1074
        %v1076 = vadd.f32 %v1072, %v1075
        %vm1077 = vweird.f32 %v1072
        %v1078 = vsel %vm1077, %v1072, %v1076
        %s1079 = vtos %v1078
        %s1080 = smul.f32 %s1071, %s1079
        %s1081 = sadd.f32 %s1080, 1e-05
        %v1082 = vstv %s1081
        %v1083 = vrsqrt.pop %v1082
        %v1084 = vmul.f32 %v1083, %v1082
        %v1085 = vmul.f32 %v1084, %v1083
        %v1086 = vmul.f32 0.5, %v1085
        %v1087 = vsub.f32 1.5, %v1086
        %v1088 = vmul.f32 %v1083, %v1087
        %vm1089 = vweird.f32 %v1082
        %vm1090 = vweird.f32 %v1083
        %vm1091 = vmor %vm1089, %vm1090
        %v1092 = vsel %vm1091, %v1083, %v1088
        %s1093 = vtos %v1092
        %v1094 = vstv %s1093
        %v1095 = vmul.f32 %v1032, %v1094
        %v1096 = vmul.f32 %v1033, %v1094
        %v1097 = vmul.f32 %v1034, %v1094
        %v1098 = vmul.f32 %v1035, %v1094
        %v1099 = vmul.f32 %v1036, %v1094
        %v1100 = vmul.f32 %v1037, %v1094
        %v1101 = vmul.f32 %v1038, %v1094
        %v1102 = vmul.f32 %v1039, %v1094
        %v1103 = vld [vmem:[#allocation8] sm:$0x1]
        %v1105 = vperm.slane %v1103, 0
        %v1107 = vmul.f32 %v1095, %v1105
        %v1108 = vmul.f32 %v1096, %v1105
        %v1109 = vmul.f32 %v1097, %v1105
        %v1110 = vmul.f32 %v1098, %v1105
        %v1111 = vmul.f32 %v1099, %v1105
        %v1112 = vmul.f32 %v1100, %v1105
        %v1113 = vmul.f32 %v1101, %v1105
        %v1114 = vmul.f32 %v1102, %v1105
        %v1115 = vld [vmem:[%s5] sm:$0x1]
        %v1117 = vperm.slane %v1115, 0
        %v1119 = vadd.f32 %v1107, %v1117
        %v1120 = vadd.f32 %v1108, %v1117
        %v1121 = vadd.f32 %v1109, %v1117
        %v1122 = vadd.f32 %v1110, %v1117
        %v1123 = vadd.f32 %v1111, %v1117
        %v1124 = vadd.f32 %v1112, %v1117
        %v1125 = vadd.f32 %v1113, %v1117
        %v1126 = vadd.f32 %v1114, %v1117
        %v1127 = vld [vmem:[%s6] sm:$0xff]
        %v1128 = vld [vmem:[%s6 + $0x8] sm:$0xff]
        %v1129 = vld [vmem:[%s6 + $0x10] sm:$0xff]
        %v1130 = vld [vmem:[%s6 + $0x18] sm:$0xff]
        %v1131 = vld [vmem:[%s6 + $0x20] sm:$0xff]
        %v1132 = vld [vmem:[%s6 + $0x28] sm:$0xff]
        %v1133 = vld [vmem:[%s6 + $0x30] sm:$0xff]
        %v1134 = vld [vmem:[%s6 + $0x38] sm:$0xff]
        %v1135 = vld [vmem:[%s6 + $0x40] sm:$0xff]
        %v1136 = vld [vmem:[%s6 + $0x48] sm:$0xff]
        %v1137 = vld [vmem:[%s6 + $0x50] sm:$0xff]
        %v1138 = vld [vmem:[%s6 + $0x58] sm:$0xff]
        %v1139 = vld [vmem:[%s6 + $0x60] sm:$0xff]
        %v1140 = vld [vmem:[%s6 + $0x68] sm:$0xff]
        %v1141 = vld [vmem:[%s6 + $0x70] sm:$0xff]
        %v1142 = vld [vmem:[%s6 + $0x78] sm:$0xff]
        %v1143 = vld [vmem:[%s7] sm:$0x1]
        %v1145 = vperm.slane %v1143, 0
        %1147 = vmatpush.msra.mxu0 %v1142
        %1148 = vmatpush.msra.mxu0 %v1141
        %1149 = vmatpush.msra.mxu0 %v1140
        %1150 = vmatpush.msra.mxu0 %v1139
        %1151 = vmatpush.msra.mxu0 %v1138
        %1152 = vmatpush.msra.mxu0 %v1137
        %1153 = vmatpush.msra.mxu0 %v1136
        %1154 = vmatpush.msra.mxu0 %v1135
        %1155 = vmatpush.msra.mxu0 %v1134
        %1156 = vmatpush.msra.mxu0 %v1133
        %1157 = vmatpush.msra.mxu0 %v1132
        %1158 = vmatpush.msra.mxu0 %v1131
        %1159 = vmatpush.msra.mxu0 %v1130
        %1160 = vmatpush.msra.mxu0 %v1129
        %1161 = vmatpush.msra.mxu0 %v1128
        %1162 = vmatpush.msra.mxu0 %v1127
        %1163 = vmatmul.f32.gmra.mxu0 %v1119
        %v1164 = vpop.f32.mrf.mxu0
        %v1165 = vadd.f32 %v1145, %v1164
        %1166 = vmatmul.f32.gmra.mxu0 %v1120
        %v1167 = vpop.f32.mrf.mxu0
        %v1168 = vadd.f32 %v1145, %v1167
        %1169 = vmatmul.f32.gmra.mxu0 %v1121
        %v1170 = vpop.f32.mrf.mxu0
        %v1171 = vadd.f32 %v1145, %v1170
        %1172 = vmatmul.f32.gmra.mxu0 %v1122
        %v1173 = vpop.f32.mrf.mxu0
        %v1174 = vadd.f32 %v1145, %v1173
        %1175 = vmatmul.f32.gmra.mxu0 %v1123
        %v1176 = vpop.f32.mrf.mxu0
        %v1177 = vadd.f32 %v1145, %v1176
        %1178 = vmatmul.f32.gmra.mxu0 %v1124
        %v1179 = vpop.f32.mrf.mxu0
        %v1180 = vadd.f32 %v1145, %v1179
        %1181 = vmatmul.f32.gmra.mxu0 %v1125
        %v1182 = vpop.f32.mrf.mxu0
        %v1183 = vadd.f32 %v1145, %v1182
        %1184 = vmatmul.f32.gmra.mxu0 %v1126
        %v1185 = vpop.f32.mrf.mxu0
        %v1186 = vadd.f32 %v1145, %v1185
        %1187 = vdwg.mxu0
        %v1188 = vld [vmem:[%s8] sm:$0xff]
        %v1189 = vld [vmem:[%s8 + $0x8] sm:$0xff]
        %v1190 = vld [vmem:[%s8 + $0x10] sm:$0xff]
        %v1191 = vld [vmem:[%s8 + $0x18] sm:$0xff]
        %v1192 = vld [vmem:[%s8 + $0x20] sm:$0xff]
        %v1193 = vld [vmem:[%s8 + $0x28] sm:$0xff]
        %v1194 = vld [vmem:[%s8 + $0x30] sm:$0xff]
        %v1195 = vld [vmem:[%s8 + $0x38] sm:$0xff]
        %v1196 = vld [vmem:[%s8 + $0x40] sm:$0xff]
        %v1197 = vld [vmem:[%s8 + $0x48] sm:$0xff]
        %v1198 = vld [vmem:[%s8 + $0x50] sm:$0xff]
        %v1199 = vld [vmem:[%s8 + $0x58] sm:$0xff]
        %v1200 = vld [vmem:[%s8 + $0x60] sm:$0xff]
        %v1201 = vld [vmem:[%s8 + $0x68] sm:$0xff]
        %v1202 = vld [vmem:[%s8 + $0x70] sm:$0xff]
        %v1203 = vld [vmem:[%s8 + $0x78] sm:$0xff]
        %v1204 = vld [vmem:[#allocation9] sm:$0x1]
        %v1206 = vperm.slane %v1204, 0
        %1208 = vmatpush.msra.mxu0 %v1203
        %1209 = vmatpush.msra.mxu0 %v1202
        %1210 = vmatpush.msra.mxu0 %v1201
        %1211 = vmatpush.msra.mxu0 %v1200
        %1212 = vmatpush.msra.mxu0 %v1199
        %1213 = vmatpush.msra.mxu0 %v1198
        %1214 = vmatpush.msra.mxu0 %v1197
        %1215 = vmatpush.msra.mxu0 %v1196
        %1216 = vmatpush.msra.mxu0 %v1195
        %1217 = vmatpush.msra.mxu0 %v1194
        %1218 = vmatpush.msra.mxu0 %v1193
        %1219 = vmatpush.msra.mxu0 %v1192
        %1220 = vmatpush.msra.mxu0 %v1191
        %1221 = vmatpush.msra.mxu0 %v1190
        %1222 = vmatpush.msra.mxu0 %v1189
        %1223 = vmatpush.msra.mxu0 %v1188
        %1224 = vmatmul.f32.gmra.mxu0 %v1119
        %v1225 = vpop.f32.mrf.mxu0
        %v1226 = vadd.f32 %v1206, %v1225
        %1227 = vmatmul.f32.gmra.mxu0 %v1120
        %v1228 = vpop.f32.mrf.mxu0
        %v1229 = vadd.f32 %v1206, %v1228
        %1230 = vmatmul.f32.gmra.mxu0 %v1121
        %v1231 = vpop.f32.mrf.mxu0
        %v1232 = vadd.f32 %v1206, %v1231
        %1233 = vmatmul.f32.gmra.mxu0 %v1122
        %v1234 = vpop.f32.mrf.mxu0
        %v1235 = vadd.f32 %v1206, %v1234
        %1236 = vmatmul.f32.gmra.mxu0 %v1123
        %v1237 = vpop.f32.mrf.mxu0
        %v1238 = vadd.f32 %v1206, %v1237
        %1239 = vmatmul.f32.gmra.mxu0 %v1124
        %v1240 = vpop.f32.mrf.mxu0
        %v1241 = vadd.f32 %v1206, %v1240
        %1242 = vmatmul.f32.gmra.mxu0 %v1125
        %v1243 = vpop.f32.mrf.mxu0
        %v1244 = vadd.f32 %v1206, %v1243
        %1245 = vmatmul.f32.gmra.mxu0 %v1126
        %v1246 = vpop.f32.mrf.mxu0
        %v1247 = vadd.f32 %v1206, %v1246
        %1248 = vdwg.mxu0
        %v1249 = vld [vmem:[%s10] sm:$0xff]
        %v1250 = vld [vmem:[%s10 + $0x8] sm:$0xff]
        %v1251 = vld [vmem:[%s10 + $0x10] sm:$0xff]
        %v1252 = vld [vmem:[%s10 + $0x18] sm:$0xff]
        %v1253 = vld [vmem:[%s10 + $0x20] sm:$0xff]
        %v1254 = vld [vmem:[%s10 + $0x28] sm:$0xff]
        %v1255 = vld [vmem:[%s10 + $0x30] sm:$0xff]
        %v1256 = vld [vmem:[%s10 + $0x38] sm:$0xff]
        %v1257 = vld [vmem:[%s10 + $0x40] sm:$0xff]
        %v1258 = vld [vmem:[%s10 + $0x48] sm:$0xff]
        %v1259 = vld [vmem:[%s10 + $0x50] sm:$0xff]
        %v1260 = vld [vmem:[%s10 + $0x58] sm:$0xff]
        %v1261 = vld [vmem:[%s10 + $0x60] sm:$0xff]
        %v1262 = vld [vmem:[%s10 + $0x68] sm:$0xff]
        %v1263 = vld [vmem:[%s10 + $0x70] sm:$0xff]
        %v1264 = vld [vmem:[%s10 + $0x78] sm:$0xff]
        %v1265 = vld [vmem:[%s11] sm:$0x1]
        %v1267 = vperm.slane %v1265, 0
        %1269 = vmatpush.msra.mxu0 %v1264
        %1270 = vmatpush.msra.mxu0 %v1263
        %1271 = vmatpush.msra.mxu0 %v1262
        %1272 = vmatpush.msra.mxu0 %v1261
        %1273 = vmatpush.msra.mxu0 %v1260
        %1274 = vmatpush.msra.mxu0 %v1259
        %1275 = vmatpush.msra.mxu0 %v1258
        %1276 = vmatpush.msra.mxu0 %v1257
        %1277 = vmatpush.msra.mxu0 %v1256
        %1278 = vmatpush.msra.mxu0 %v1255
        %1279 = vmatpush.msra.mxu0 %v1254
        %1280 = vmatpush.msra.mxu0 %v1253
        %1281 = vmatpush.msra.mxu0 %v1252
        %1282 = vmatpush.msra.mxu0 %v1251
        %1283 = vmatpush.msra.mxu0 %v1250
        %1284 = vmatpush.msra.mxu0 %v1249
        %1285 = vmatmul.f32.gmra.mxu0 %v1119
        %v1286 = vpop.f32.mrf.mxu0
        %v1287 = vadd.f32 %v1267, %v1286
        %1288 = vmatmul.f32.gmra.mxu0 %v1120
        %v1289 = vpop.f32.mrf.mxu0
        %v1290 = vadd.f32 %v1267, %v1289
        %1291 = vmatmul.f32.gmra.mxu0 %v1121
        %v1292 = vpop.f32.mrf.mxu0
        %v1293 = vadd.f32 %v1267, %v1292
        %1294 = vmatmul.f32.gmra.mxu0 %v1122
        %v1295 = vpop.f32.mrf.mxu0
        %v1296 = vadd.f32 %v1267, %v1295
        %1297 = vmatmul.f32.gmra.mxu0 %v1123
        %v1298 = vpop.f32.mrf.mxu0
        %v1299 = vadd.f32 %v1267, %v1298
        %1300 = vmatmul.f32.gmra.mxu0 %v1124
        %v1301 = vpop.f32.mrf.mxu0
        %v1302 = vadd.f32 %v1267, %v1301
        %1303 = vmatmul.f32.gmra.mxu0 %v1125
        %v1304 = vpop.f32.mrf.mxu0
        %v1305 = vadd.f32 %v1267, %v1304
        %1306 = vmatmul.f32.gmra.mxu0 %v1126
        %v1307 = vpop.f32.mrf.mxu0
        %v1308 = vadd.f32 %v1267, %v1307
        %1309 = vdwg.mxu0
        %vm1310 = vcmask 130048
        %v1312 = vsel %vm1310, %v1165, 0
        %v1315 = vsel %vm1310, %v1168, 0
        %v1318 = vsel %vm1310, %v1171, 0
        %v1321 = vsel %vm1310, %v1174, 0
        %v1324 = vsel %vm1310, %v1177, 0
        %v1327 = vsel %vm1310, %v1180, 0
        %v1330 = vsel %vm1310, %v1183, 0
        %v1333 = vsel %vm1310, %v1186, 0
        %v1336 = vsel %vm1310, %v1226, 0
        %v1339 = vsel %vm1310, %v1229, 0
        %v1342 = vsel %vm1310, %v1232, 0
        %v1345 = vsel %vm1310, %v1235, 0
        %v1348 = vsel %vm1310, %v1238, 0
        %v1351 = vsel %vm1310, %v1241, 0
        %v1354 = vsel %vm1310, %v1244, 0
        %v1357 = vsel %vm1310, %v1247, 0
        %1359 = vmatpush.xpose.msra.mxu0 0.0
        %1360 = vmatpush.xpose.msra.mxu0 0.0
        %1361 = vmatpush.xpose.msra.mxu0 0.0
        %1362 = vmatpush.xpose.msra.mxu0 0.0
        %1363 = vmatpush.xpose.msra.mxu0 0.0
        %1364 = vmatpush.xpose.msra.mxu0 0.0
        %1365 = vmatpush.xpose.msra.mxu0 0.0
        %1366 = vmatpush.xpose.msra.mxu0 0.0
        %1367 = vmatpush.xpose.msra.mxu0 %v1357
        %1368 = vmatpush.xpose.msra.mxu0 %v1354
        %1369 = vmatpush.xpose.msra.mxu0 %v1351
        %1370 = vmatpush.xpose.msra.mxu0 %v1348
        %1371 = vmatpush.xpose.msra.mxu0 %v1345
        %1372 = vmatpush.xpose.msra.mxu0 %v1342
        %1373 = vmatpush.xpose.msra.mxu0 %v1339
        %1374 = vmatpush.xpose.msra.mxu0 %v1336
        %1375 = vmatmul.f32.gmra.mxu0 %v1312
        %v1376 = vpop.f32.mrf.mxu0
        %v1377 = vadd.f32 0.0, %v1376
        %1378 = vmatmul.f32.gmra.mxu0 %v1315
        %v1379 = vpop.f32.mrf.mxu0
        %v1380 = vadd.f32 0.0, %v1379
        %1381 = vmatmul.f32.gmra.mxu0 %v1318
        %v1382 = vpop.f32.mrf.mxu0
        %v1383 = vadd.f32 0.0, %v1382
        %1384 = vmatmul.f32.gmra.mxu0 %v1321
        %v1385 = vpop.f32.mrf.mxu0
        %v1386 = vadd.f32 0.0, %v1385
        %1387 = vmatmul.f32.gmra.mxu0 %v1324
        %v1388 = vpop.f32.mrf.mxu0
        %v1389 = vadd.f32 0.0, %v1388
        %1390 = vmatmul.f32.gmra.mxu0 %v1327
        %v1391 = vpop.f32.mrf.mxu0
        %v1392 = vadd.f32 0.0, %v1391
        %1393 = vmatmul.f32.gmra.mxu0 %v1330
        %v1394 = vpop.f32.mrf.mxu0
        %v1395 = vadd.f32 0.0, %v1394
        %1396 = vmatmul.f32.gmra.mxu0 %v1333
        %v1397 = vpop.f32.mrf.mxu0
        %v1398 = vadd.f32 0.0, %v1397
        %1399 = vdwg.mxu0
        %v1400 = vmul.f32 %v1377, 0.25
        %v1401 = vmul.f32 %v1380, 0.25
        %v1402 = vmul.f32 %v1383, 0.25
        %v1403 = vmul.f32 %v1386, 0.25
        %v1404 = vmul.f32 %v1389, 0.25
        %v1405 = vmul.f32 %v1392, 0.25
        %v1406 = vmul.f32 %v1395, 0.25
        %v1407 = vmul.f32 %v1398, 0.25
        %vm1408 = vcmask 523264
        %v1409 = vsel %vm1408, %v1400, -inf
        %1410 = vmax.xlane.f32.xlu0 %v1409
        %v1411 = vpop.xlane.xlu0 %1410
        %v1412 = vsel %vm1408, %v1401, -inf
        %1413 = vmax.xlane.f32.xlu0 %v1412
        %v1414 = vpop.xlane.xlu0 %1413
        %v1415 = vsel %vm1408, %v1402, -inf
        %1416 = vmax.xlane.f32.xlu0 %v1415
        %v1417 = vpop.xlane.xlu0 %1416
        %v1418 = vsel %vm1408, %v1403, -inf
        %1419 = vmax.xlane.f32.xlu0 %v1418
        %v1420 = vpop.xlane.xlu0 %1419
        %v1421 = vsel %vm1408, %v1404, -inf
        %1422 = vmax.xlane.f32.xlu0 %v1421
        %v1423 = vpop.xlane.xlu0 %1422
        %v1424 = vsel %vm1408, %v1405, -inf
        %1425 = vmax.xlane.f32.xlu0 %v1424
        %v1426 = vpop.xlane.xlu0 %1425
        %v1427 = vsel %vm1408, %v1406, -inf
        %1428 = vmax.xlane.f32.xlu0 %v1427
        %v1429 = vpop.xlane.xlu0 %1428
        %v1430 = vsel %vm1408, %v1407, -inf
        %1431 = vmax.xlane.f32.xlu0 %v1430
        %v1432 = vpop.xlane.xlu0 %1431
        %v1433 = vsub.f32 %v1400, %v1411
        %v1434 = vsub.f32 %v1401, %v1414
        %v1435 = vsub.f32 %v1402, %v1417
        %v1436 = vsub.f32 %v1403, %v1420
        %v1437 = vsub.f32 %v1404, %v1423
        %v1438 = vsub.f32 %v1405, %v1426
        %v1439 = vsub.f32 %v1406, %v1429
        %v1440 = vsub.f32 %v1407, %v1432
        %v1441 = vmul.f32 %v1433, 1.442695
        %v1442 = vpow.pop %v1441
        %v1443 = vmul.f32 %v1434, 1.442695
        %v1444 = vpow.pop %v1443
        %v1445 = vmul.f32 %v1435, 1.442695
        %v1446 = vpow.pop %v1445
        %v1447 = vmul.f32 %v1436, 1.442695
        %v1448 = vpow.pop %v1447
        %v1449 = vmul.f32 %v1437, 1.442695
        %v1450 = vpow.pop %v1449
        %v1451 = vmul.f32 %v1438, 1.442695
        %v1452 = vpow.pop %v1451
        %v1453 = vmul.f32 %v1439, 1.442695
        %v1454 = vpow.pop %v1453
        %v1455 = vmul.f32 %v1440, 1.442695
        %v1456 = vpow.pop %v1455
        %v1457 = vsel %vm1408, %v1442, 0.0
        %1458 = vadd.xlane.f32.xlu0 %v1457
        %v1459 = vpop.xlane.xlu0 %1458
        %v1460 = vsel %vm1408, %v1444, 0.0
        %1461 = vadd.xlane.f32.xlu0 %v1460
        %v1462 = vpop.xlane.xlu0 %1461
        %v1463 = vsel %vm1408, %v1446, 0.0
        %1464 = vadd.xlane.f32.xlu0 %v1463
        %v1465 = vpop.xlane.xlu0 %1464
        %v1466 = vsel %vm1408, %v1448, 0.0
        %1467 = vadd.xlane.f32.xlu0 %v1466
        %v1468 = vpop.xlane.xlu0 %1467
        %v1469 = vsel %vm1408, %v1450, 0.0
        %1470 = vadd.xlane.f32.xlu0 %v1469
        %v1471 = vpop.xlane.xlu0 %1470
        %v1472 = vsel %vm1408, %v1452, 0.0
        %1473 = vadd.xlane.f32.xlu0 %v1472
        %v1474 = vpop.xlane.xlu0 %1473
        %v1475 = vsel %vm1408, %v1454, 0.0
        %1476 = vadd.xlane.f32.xlu0 %v1475
        %v1477 = vpop.xlane.xlu0 %1476
        %v1478 = vsel %vm1408, %v1456, 0.0
        %1479 = vadd.xlane.f32.xlu0 %v1478
        %v1480 = vpop.xlane.xlu0 %1479
        %v1481 = vrcp.pop %v1459
        %v1482 = vmul.f32 %v1459, %v1481
        %v1483 = vsub.f32 1.0, %v1482
        %v1484 = vmul.f32 %v1481, %v1483
        %v1485 = vadd.f32 %v1481, %v1484
        %vm1486 = vweird.f32 %v1459
        %vm1487 = vweird.f32 %v1481
        %vm1488 = vmor %vm1486, %vm1487
        %v1489 = vsel %vm1488, %v1481, %v1485
        %v1490 = vand.u32 2147483647, %v1459
        %vm1491 = vcmp.eq.f32.partialorder %v1490, 8.507059e+37
        %v1492 = vand.u32 %v1459, 2147483648
        %v1493 = vor.u32 1.1754944e-38, %v1492
        %v1494 = vsel %vm1491, %v1493, %v1489
        %v1495 = vmul.f32 %v1442, %v1494
        %v1496 = vrcp.pop %v1462
        %v1497 = vmul.f32 %v1462, %v1496
        %v1498 = vsub.f32 1.0, %v1497
        %v1499 = vmul.f32 %v1496, %v1498
        %v1500 = vadd.f32 %v1496, %v1499
        %vm1501 = vweird.f32 %v1462
        %vm1502 = vweird.f32 %v1496
        %vm1503 = vmor %vm1501, %vm1502
        %v1504 = vsel %vm1503, %v1496, %v1500
        %v1505 = vand.u32 2147483647, %v1462
        %vm1506 = vcmp.eq.f32.partialorder %v1505, 8.507059e+37
        %v1507 = vand.u32 %v1462, 2147483648
        %v1508 = vor.u32 1.1754944e-38, %v1507
        %v1509 = vsel %vm1506, %v1508, %v1504
        %v1510 = vmul.f32 %v1444, %v1509
        %v1511 = vrcp.pop %v1465
        %v1512 = vmul.f32 %v1465, %v1511
        %v1513 = vsub.f32 1.0, %v1512
        %v1514 = vmul.f32 %v1511, %v1513
        %v1515 = vadd.f32 %v1511, %v1514
        %vm1516 = vweird.f32 %v1465
        %vm1517 = vweird.f32 %v1511
        %vm1518 = vmor %vm1516, %vm1517
        %v1519 = vsel %vm1518, %v1511, %v1515
        %v1520 = vand.u32 2147483647, %v1465
        %vm1521 = vcmp.eq.f32.partialorder %v1520, 8.507059e+37
        %v1522 = vand.u32 %v1465, 2147483648
        %v1523 = vor.u32 1.1754944e-38, %v1522
        %v1524 = vsel %vm1521, %v1523, %v1519
        %v1525 = vmul.f32 %v1446, %v1524
        %v1526 = vrcp.pop %v1468
        %v1527 = vmul.f32 %v1468, %v1526
        %v1528 = vsub.f32 1.0, %v1527
        %v1529 = vmul.f32 %v1526, %v1528
        %v1530 = vadd.f32 %v1526, %v1529
        %vm1531 = vweird.f32 %v1468
        %vm1532 = vweird.f32 %v1526
        %vm1533 = vmor %vm1531, %vm1532
        %v1534 = vsel %vm1533, %v1526, %v1530
        %v1535 = vand.u32 2147483647, %v1468
        %vm1536 = vcmp.eq.f32.partialorder %v1535, 8.507059e+37
        %v1537 = vand.u32 %v1468, 2147483648
        %v1538 = vor.u32 1.1754944e-38, %v1537
        %v1539 = vsel %vm1536, %v1538, %v1534
        %v1540 = vmul.f32 %v1448, %v1539
        %v1541 = vrcp.pop %v1471
        %v1542 = vmul.f32 %v1471, %v1541
        %v1543 = vsub.f32 1.0, %v1542
        %v1544 = vmul.f32 %v1541, %v1543
        %v1545 = vadd.f32 %v1541, %v1544
        %vm1546 = vweird.f32 %v1471
        %vm1547 = vweird.f32 %v1541
        %vm1548 = vmor %vm1546, %vm1547
        %v1549 = vsel %vm1548, %v1541, %v1545
        %v1550 = vand.u32 2147483647, %v1471
        %vm1551 = vcmp.eq.f32.partialorder %v1550, 8.507059e+37
        %v1552 = vand.u32 %v1471, 2147483648
        %v1553 = vor.u32 1.1754944e-38, %v1552
        %v1554 = vsel %vm1551, %v1553, %v1549
        %v1555 = vmul.f32 %v1450, %v1554
        %v1556 = vrcp.pop %v1474
        %v1557 = vmul.f32 %v1474, %v1556
        %v1558 = vsub.f32 1.0, %v1557
        %v1559 = vmul.f32 %v1556, %v1558
        %v1560 = vadd.f32 %v1556, %v1559
        %vm1561 = vweird.f32 %v1474
        %vm1562 = vweird.f32 %v1556
        %vm1563 = vmor %vm1561, %vm1562
        %v1564 = vsel %vm1563, %v1556, %v1560
        %v1565 = vand.u32 2147483647, %v1474
        %vm1566 = vcmp.eq.f32.partialorder %v1565, 8.507059e+37
        %v1567 = vand.u32 %v1474, 2147483648
        %v1568 = vor.u32 1.1754944e-38, %v1567
        %v1569 = vsel %vm1566, %v1568, %v1564
        %v1570 = vmul.f32 %v1452, %v1569
        %v1571 = vrcp.pop %v1477
        %v1572 = vmul.f32 %v1477, %v1571
        %v1573 = vsub.f32 1.0, %v1572
        %v1574 = vmul.f32 %v1571, %v1573
        %v1575 = vadd.f32 %v1571, %v1574
        %vm1576 = vweird.f32 %v1477
        %vm1577 = vweird.f32 %v1571
        %vm1578 = vmor %vm1576, %vm1577
        %v1579 = vsel %vm1578, %v1571, %v1575
        %v1580 = vand.u32 2147483647, %v1477
        %vm1581 = vcmp.eq.f32.partialorder %v1580, 8.507059e+37
        %v1582 = vand.u32 %v1477, 2147483648
        %v1583 = vor.u32 1.1754944e-38, %v1582
        %v1584 = vsel %vm1581, %v1583, %v1579
        %v1585 = vmul.f32 %v1454, %v1584
        %v1586 = vrcp.pop %v1480
        %v1587 = vmul.f32 %v1480, %v1586
        %v1588 = vsub.f32 1.0, %v1587
        %v1589 = vmul.f32 %v1586, %v1588
        %v1590 = vadd.f32 %v1586, %v1589
        %vm1591 = vweird.f32 %v1480
        %vm1592 = vweird.f32 %v1586
        %vm1593 = vmor %vm1591, %vm1592
        %v1594 = vsel %vm1593, %v1586, %v1590
        %v1595 = vand.u32 2147483647, %v1480
        %vm1596 = vcmp.eq.f32.partialorder %v1595, 8.507059e+37
        %v1597 = vand.u32 %v1480, 2147483648
        %v1598 = vor.u32 1.1754944e-38, %v1597
        %v1599 = vsel %vm1596, %v1598, %v1594
        %v1600 = vmul.f32 %v1456, %v1599
        %v1602 = vsel %vm1408, %v1495, 0
        %v1605 = vsel %vm1408, %v1510, 0
        %v1608 = vsel %vm1408, %v1525, 0
        %v1611 = vsel %vm1408, %v1540, 0
        %v1614 = vsel %vm1408, %v1555, 0
        %v1617 = vsel %vm1408, %v1570, 0
        %v1620 = vsel %vm1408, %v1585, 0
        %v1623 = vsel %vm1408, %v1600, 0
        %1625 = vmatpush.msra.mxu0 0.0
        %1626 = vmatpush.msra.mxu0 0.0
        %1627 = vmatpush.msra.mxu0 0.0
        %1628 = vmatpush.msra.mxu0 0.0
        %1629 = vmatpush.msra.mxu0 0.0
        %1630 = vmatpush.msra.mxu0 0.0
        %1631 = vmatpush.msra.mxu0 0.0
        %1632 = vmatpush.msra.mxu0 0.0
        %1633 = vmatpush.msra.mxu0 %v1308
        %1634 = vmatpush.msra.mxu0 %v1305
        %1635 = vmatpush.msra.mxu0 %v1302
        %1636 = vmatpush.msra.mxu0 %v1299
        %1637 = vmatpush.msra.mxu0 %v1296
        %1638 = vmatpush.msra.mxu0 %v1293
        %1639 = vmatpush.msra.mxu0 %v1290
        %1640 = vmatpush.msra.mxu0 %v1287
        %1641 = vmatmul.f32.gmra.mxu0 %v1602
        %v1642 = vpop.f32.mrf.mxu0
        %v1643 = vadd.f32 0.0, %v1642
        %1644 = vmatmul.f32.gmra.mxu0 %v1605
        %v1645 = vpop.f32.mrf.mxu0
        %v1646 = vadd.f32 0.0, %v1645
        %1647 = vmatmul.f32.gmra.mxu0 %v1608
        %v1648 = vpop.f32.mrf.mxu0
        %v1649 = vadd.f32 0.0, %v1648
        %1650 = vmatmul.f32.gmra.mxu0 %v1611
        %v1651 = vpop.f32.mrf.mxu0
        %v1652 = vadd.f32 0.0, %v1651
        %1653 = vmatmul.f32.gmra.mxu0 %v1614
        %v1654 = vpop.f32.mrf.mxu0
        %v1655 = vadd.f32 0.0, %v1654
        %1656 = vmatmul.f32.gmra.mxu0 %v1617
        %v1657 = vpop.f32.mrf.mxu0
        %v1658 = vadd.f32 0.0, %v1657
        %1659 = vmatmul.f32.gmra.mxu0 %v1620
        %v1660 = vpop.f32.mrf.mxu0
        %v1661 = vadd.f32 0.0, %v1660
        %1662 = vmatmul.f32.gmra.mxu0 %v1623
        %v1663 = vpop.f32.mrf.mxu0
        %v1664 = vadd.f32 0.0, %v1663
        %1665 = vdwg.mxu0
        %v1666 = vmax.f32 %v1643, 0.0
        %v1667 = vmax.f32 %v1646, 0.0
        %v1668 = vmax.f32 %v1649, 0.0
        %v1669 = vmax.f32 %v1652, 0.0
        %v1670 = vmax.f32 %v1655, 0.0
        %v1671 = vmax.f32 %v1658, 0.0
        %v1672 = vmax.f32 %v1661, 0.0
        %v1673 = vmax.f32 %v1664, 0.0
        %v1674 = vld [vmem:[#allocation11] sm:$0xff]
        %v1675 = vld [vmem:[#allocation11 + $0x8] sm:$0xff]
        %v1676 = vld [vmem:[#allocation11 + $0x10] sm:$0xff]
        %v1677 = vld [vmem:[#allocation11 + $0x18] sm:$0xff]
        %v1678 = vmax.f32 %v986, 0.0
        %v1679 = vmax.f32 %v987, 0.0
        %v1680 = vmax.f32 %v988, 0.0
        %v1681 = vmax.f32 %v989, 0.0
        %v1682 = vmax.f32 %v990, 0.0
        %v1683 = vmax.f32 %v991, 0.0
        %v1684 = vmax.f32 %v992, 0.0
        %v1685 = vmax.f32 %v993, 0.0
        %v1686 = vld [vmem:[#allocation12] sm:$0xff]
        %v1687 = vld [vmem:[#allocation12 + $0x8] sm:$0xff]
        %v1688 = vld [vmem:[#allocation12 + $0x10] sm:$0xff]
        %v1689 = vld [vmem:[#allocation12 + $0x18] sm:$0xff]
        %v1690 = vld [vmem:[#allocation12 + $0x20] sm:$0xff]
        %v1691 = vld [vmem:[#allocation12 + $0x28] sm:$0xff]
        %v1692 = vld [vmem:[#allocation12 + $0x30] sm:$0xff]
        %v1693 = vld [vmem:[#allocation12 + $0x38] sm:$0xff]
        %v1694 = vld [vmem:[#allocation12 + $0x40] sm:$0xff]
        %v1695 = vld [vmem:[#allocation12 + $0x48] sm:$0xff]
        %v1696 = vld [vmem:[#allocation12 + $0x50] sm:$0xff]
        %v1697 = vld [vmem:[#allocation12 + $0x58] sm:$0xff]
        %v1698 = vld [vmem:[#allocation12 + $0x60] sm:$0xff]
        %v1699 = vld [vmem:[#allocation12 + $0x68] sm:$0xff]
        %v1700 = vld [vmem:[#allocation12 + $0x70] sm:$0xff]
        %v1701 = vld [vmem:[#allocation12 + $0x78] sm:$0xff]
        %1702 = vmatpush.msra.mxu0 %v1701
        %1703 = vmatpush.msra.mxu0 %v1700
        %1704 = vmatpush.msra.mxu0 %v1699
        %1705 = vmatpush.msra.mxu0 %v1698
        %1706 = vmatpush.msra.mxu0 %v1697
        %1707 = vmatpush.msra.mxu0 %v1696
        %1708 = vmatpush.msra.mxu0 %v1695
        %1709 = vmatpush.msra.mxu0 %v1694
        %1710 = vmatpush.msra.mxu0 %v1693
        %1711 = vmatpush.msra.mxu0 %v1692
        %1712 = vmatpush.msra.mxu0 %v1691
        %1713 = vmatpush.msra.mxu0 %v1690
        %1714 = vmatpush.msra.mxu0 %v1689
        %1715 = vmatpush.msra.mxu0 %v1688
        %1716 = vmatpush.msra.mxu0 %v1687
        %1717 = vmatpush.msra.mxu0 %v1686
        %1718 = vmatmul.f32.gmra.mxu0 %v1678
        %v1719 = vpop.f32.mrf.mxu0
        %v1720 = vadd.f32 0.0, %v1719
        %1721 = vmatmul.f32.gmra.mxu0 %v1679
        %v1722 = vpop.f32.mrf.mxu0
        %v1723 = vadd.f32 0.0, %v1722
        %1724 = vmatmul.f32.gmra.mxu0 %v1680
        %v1725 = vpop.f32.mrf.mxu0
        %v1726 = vadd.f32 0.0, %v1725
        %1727 = vmatmul.f32.gmra.mxu0 %v1681
        %v1728 = vpop.f32.mrf.mxu0
        %v1729 = vadd.f32 0.0, %v1728
        %1730 = vmatmul.f32.gmra.mxu0 %v1682
        %v1731 = vpop.f32.mrf.mxu0
        %v1732 = vadd.f32 0.0, %v1731
        %1733 = vmatmul.f32.gmra.mxu0 %v1683
        %v1734 = vpop.f32.mrf.mxu0
        %v1735 = vadd.f32 0.0, %v1734
        %1736 = vmatmul.f32.gmra.mxu0 %v1684
        %v1737 = vpop.f32.mrf.mxu0
        %v1738 = vadd.f32 0.0, %v1737
        %1739 = vmatmul.f32.gmra.mxu0 %v1685
        %v1740 = vpop.f32.mrf.mxu0
        %v1741 = vadd.f32 0.0, %v1740
        %1742 = vdwg.mxu0
        %vm1743 = vcmask 261120
        %v1745 = vsel %vm1743, %v1666, 0
        %v1748 = vsel %vm1743, %v1667, 0
        %v1751 = vsel %vm1743, %v1668, 0
        %v1754 = vsel %vm1743, %v1669, 0
        %v1757 = vsel %vm1743, %v1670, 0
        %v1760 = vsel %vm1743, %v1671, 0
        %v1763 = vsel %vm1743, %v1672, 0
        %v1766 = vsel %vm1743, %v1673, 0
        %1768 = vmatpush.msra.mxu0 0.0
        %1769 = vmatpush.msra.mxu0 0.0
        %1770 = vmatpush.msra.mxu0 0.0
        %1771 = vmatpush.msra.mxu0 0.0
        %1772 = vmatpush.msra.mxu0 0.0
        %1773 = vmatpush.msra.mxu0 0.0
        %1774 = vmatpush.msra.mxu0 0.0
        %1775 = vmatpush.msra.mxu0 0.0
        %1776 = vmatpush.msra.mxu0 0.0
        %1777 = vmatpush.msra.mxu0 0.0
        %1778 = vmatpush.msra.mxu0 0.0
        %1779 = vmatpush.msra.mxu0 0.0
        %1780 = vmatpush.msra.mxu0 %v1677
        %1781 = vmatpush.msra.mxu0 %v1676
        %1782 = vmatpush.msra.mxu0 %v1675
        %1783 = vmatpush.msra.mxu0 %v1674
        %1784 = vmatmul.f32.gmra.mxu0 %v1745
        %v1785 = vpop.f32.mrf.mxu0
        %v1786 = vadd.f32 %v1720, %v1785
        %1787 = vmatmul.f32.gmra.mxu0 %v1748
        %v1788 = vpop.f32.mrf.mxu0
        %v1789 = vadd.f32 %v1723, %v1788
        %1790 = vmatmul.f32.gmra.mxu0 %v1751
        %v1791 = vpop.f32.mrf.mxu0
        %v1792 = vadd.f32 %v1726, %v1791
        %1793 = vmatmul.f32.gmra.mxu0 %v1754
        %v1794 = vpop.f32.mrf.mxu0
        %v1795 = vadd.f32 %v1729, %v1794
        %1796 = vmatmul.f32.gmra.mxu0 %v1757
        %v1797 = vpop.f32.mrf.mxu0
        %v1798 = vadd.f32 %v1732, %v1797
        %1799 = vmatmul.f32.gmra.mxu0 %v1760
        %v1800 = vpop.f32.mrf.mxu0
        %v1801 = vadd.f32 %v1735, %v1800
        %1802 = vmatmul.f32.gmra.mxu0 %v1763
        %v1803 = vpop.f32.mrf.mxu0
        %v1804 = vadd.f32 %v1738, %v1803
        %1805 = vmatmul.f32.gmra.mxu0 %v1766
        %v1806 = vpop.f32.mrf.mxu0
        %v1807 = vadd.f32 %v1741, %v1806
        %1808 = vdwg.mxu0
        %v1809 = vld [vmem:[%s14] sm:$0x1]
        %v1811 = vperm.slane %v1809, 0
        %v1813 = vadd.f32 %v1786, %v1811
        %v1814 = vadd.f32 %v1789, %v1811
        %v1815 = vadd.f32 %v1792, %v1811
        %v1816 = vadd.f32 %v1795, %v1811
        %v1817 = vadd.f32 %v1798, %v1811
        %v1818 = vadd.f32 %v1801, %v1811
        %v1819 = vadd.f32 %v1804, %v1811
        %v1820 = vadd.f32 %v1807, %v1811
        %v1821 = vadd.f32 %v986, %v1813
        %v1822 = vadd.f32 %v987, %v1814
        %v1823 = vadd.f32 %v988, %v1815
        %v1824 = vadd.f32 %v989, %v1816
        %v1825 = vadd.f32 %v990, %v1817
        %v1826 = vadd.f32 %v991, %v1818
        %v1827 = vadd.f32 %v992, %v1819
        %v1828 = vadd.f32 %v993, %v1820
        %v1829 = vld [vmem:[%s15] sm:$0xff]
        %v1830 = vld [vmem:[%s15 + $0x8] sm:$0xff]
        %v1831 = vld [vmem:[%s15 + $0x10] sm:$0xff]
        %v1832 = vld [vmem:[%s15 + $0x18] sm:$0xff]
        %v1833 = vld [vmem:[%s15 + $0x20] sm:$0xff]
        %v1834 = vld [vmem:[%s15 + $0x28] sm:$0xff]
        %v1835 = vld [vmem:[%s15 + $0x30] sm:$0xff]
        %v1836 = vld [vmem:[%s15 + $0x38] sm:$0xff]
        %v1837 = vld [vmem:[%s15 + $0x40] sm:$0xff]
        %v1838 = vld [vmem:[%s15 + $0x48] sm:$0xff]
        %v1839 = vld [vmem:[%s15 + $0x50] sm:$0xff]
        %v1840 = vld [vmem:[%s15 + $0x58] sm:$0xff]
        %v1841 = vld [vmem:[%s15 + $0x60] sm:$0xff]
        %v1842 = vld [vmem:[%s15 + $0x68] sm:$0xff]
        %v1843 = vld [vmem:[%s15 + $0x70] sm:$0xff]
        %v1844 = vld [vmem:[%s15 + $0x78] sm:$0xff]
        %v1845 = vld [vmem:[%s15 + $0x80] sm:$0xff]
        %v1846 = vld [vmem:[%s15 + $0x88] sm:$0xff]
        %v1847 = vld [vmem:[%s15 + $0x90] sm:$0xff]
        %v1848 = vld [vmem:[%s15 + $0x98] sm:$0xff]
        %v1849 = vld [vmem:[%s15 + $0xa0] sm:$0xff]
        %v1850 = vld [vmem:[%s15 + $0xa8] sm:$0xff]
        %v1851 = vld [vmem:[%s15 + $0xb0] sm:$0xff]
        %v1852 = vld [vmem:[%s15 + $0xb8] sm:$0xff]
        %v1853 = vld [vmem:[%s15 + $0xc0] sm:$0xff]
        %v1854 = vld [vmem:[%s15 + $0xc8] sm:$0xff]
        %v1855 = vld [vmem:[%s15 + $0xd0] sm:$0xff]
        %v1856 = vld [vmem:[%s15 + $0xd8] sm:$0xff]
        %v1857 = vld [vmem:[%s15 + $0xe0] sm:$0xff]
        %v1858 = vld [vmem:[%s15 + $0xe8] sm:$0xff]
        %v1859 = vld [vmem:[%s15 + $0xf0] sm:$0xff]
        %v1860 = vld [vmem:[%s15 + $0xf8] sm:$0xff]
        %v1861 = vld [vmem:[%s16] sm:$0x3]
        %v1863 = vperm.slane %v1861, 0
        %v1864 = vperm.slane %v1861, 1
        %1867 = vmatpush.msra.mxu0 %v1859
        %1868 = vmatpush.msra.mxu0 %v1857
        %1869 = vmatpush.msra.mxu0 %v1855
        %1870 = vmatpush.msra.mxu0 %v1853
        %1871 = vmatpush.msra.mxu0 %v1851
        %1872 = vmatpush.msra.mxu0 %v1849
        %1873 = vmatpush.msra.mxu0 %v1847
        %1874 = vmatpush.msra.mxu0 %v1845
        %1875 = vmatpush.msra.mxu0 %v1843
        %1876 = vmatpush.msra.mxu0 %v1841
        %1877 = vmatpush.msra.mxu0 %v1839
        %1878 = vmatpush.msra.mxu0 %v1837
        %1879 = vmatpush.msra.mxu0 %v1835
        %1880 = vmatpush.msra.mxu0 %v1833
        %1881 = vmatpush.msra.mxu0 %v1831
        %1882 = vmatpush.msra.mxu0 %v1829
        %1883 = vmatmul.f32.gmra.mxu0 %v1821
        %v1884 = vpop.f32.mrf.mxu0
        %v1885 = vadd.f32 %v1863, %v1884
        %1886 = vmatmul.f32.gmra.mxu0 %v1822
        %v1887 = vpop.f32.mrf.mxu0
        %v1888 = vadd.f32 %v1863, %v1887
        %1889 = vmatmul.f32.gmra.mxu0 %v1823
        %v1890 = vpop.f32.mrf.mxu0
        %v1891 = vadd.f32 %v1863, %v1890
        %1892 = vmatmul.f32.gmra.mxu0 %v1824
        %v1893 = vpop.f32.mrf.mxu0
        %v1894 = vadd.f32 %v1863, %v1893
        %1895 = vmatmul.f32.gmra.mxu0 %v1825
        %v1896 = vpop.f32.mrf.mxu0
        %v1897 = vadd.f32 %v1863, %v1896
        %1898 = vmatmul.f32.gmra.mxu0 %v1826
        %v1899 = vpop.f32.mrf.mxu0
        %v1900 = vadd.f32 %v1863, %v1899
        %1901 = vmatmul.f32.gmra.mxu0 %v1827
        %v1902 = vpop.f32.mrf.mxu0
        %v1903 = vadd.f32 %v1863, %v1902
        %1904 = vmatmul.f32.gmra.mxu0 %v1828
        %v1905 = vpop.f32.mrf.mxu0
        %v1906 = vadd.f32 %v1863, %v1905
        %1907 = vdwg.mxu0
        %1908 = vmatpush.msra.mxu0 %v1860
        %1909 = vmatpush.msra.mxu0 %v1858
        %1910 = vmatpush.msra.mxu0 %v1856
        %1911 = vmatpush.msra.mxu0 %v1854
        %1912 = vmatpush.msra.mxu0 %v1852
        %1913 = vmatpush.msra.mxu0 %v1850
        %1914 = vmatpush.msra.mxu0 %v1848
        %1915 = vmatpush.msra.mxu0 %v1846
        %1916 = vmatpush.msra.mxu0 %v1844
        %1917 = vmatpush.msra.mxu0 %v1842
        %1918 = vmatpush.msra.mxu0 %v1840
        %1919 = vmatpush.msra.mxu0 %v1838
        %1920 = vmatpush.msra.mxu0 %v1836
        %1921 = vmatpush.msra.mxu0 %v1834
        %1922 = vmatpush.msra.mxu0 %v1832
        %1923 = vmatpush.msra.mxu0 %v1830
        %1924 = vmatmul.f32.gmra.mxu0 %v1821
        %v1925 = vpop.f32.mrf.mxu0
        %v1926 = vadd.f32 %v1864, %v1925
        %1927 = vmatmul.f32.gmra.mxu0 %v1822
        %v1928 = vpop.f32.mrf.mxu0
        %v1929 = vadd.f32 %v1864, %v1928
        %1930 = vmatmul.f32.gmra.mxu0 %v1823
        %v1931 = vpop.f32.mrf.mxu0
        %v1932 = vadd.f32 %v1864, %v1931
        %1933 = vmatmul.f32.gmra.mxu0 %v1824
        %v1934 = vpop.f32.mrf.mxu0
        %v1935 = vadd.f32 %v1864, %v1934
        %1936 = vmatmul.f32.gmra.mxu0 %v1825
        %v1937 = vpop.f32.mrf.mxu0
        %v1938 = vadd.f32 %v1864, %v1937
        %1939 = vmatmul.f32.gmra.mxu0 %v1826
        %v1940 = vpop.f32.mrf.mxu0
        %v1941 = vadd.f32 %v1864, %v1940
        %1942 = vmatmul.f32.gmra.mxu0 %v1827
        %v1943 = vpop.f32.mrf.mxu0
        %v1944 = vadd.f32 %v1864, %v1943
        %1945 = vmatmul.f32.gmra.mxu0 %v1828
        %v1946 = vpop.f32.mrf.mxu0
        %v1947 = vadd.f32 %v1864, %v1946
        %1948 = vdwg.mxu0
        %v1949 = vmax.f32 %v1885, 0.0
        %v1950 = vmax.f32 %v1926, 0.0
        %v1951 = vmax.f32 %v1888, 0.0
        %v1952 = vmax.f32 %v1929, 0.0
        %v1953 = vmax.f32 %v1891, 0.0
        %v1954 = vmax.f32 %v1932, 0.0
        %v1955 = vmax.f32 %v1894, 0.0
        %v1956 = vmax.f32 %v1935, 0.0
        %v1957 = vmax.f32 %v1897, 0.0
        %v1958 = vmax.f32 %v1938, 0.0
        %v1959 = vmax.f32 %v1900, 0.0
        %v1960 = vmax.f32 %v1941, 0.0
        %v1961 = vmax.f32 %v1903, 0.0
        %v1962 = vmax.f32 %v1944, 0.0
        %v1963 = vmax.f32 %v1906, 0.0
        %v1964 = vmax.f32 %v1947, 0.0
        %v1965 = vld [vmem:[#allocation14] sm:$0xff]
        %v1966 = vld [vmem:[#allocation14 + $0x8] sm:$0xff]
        %v1967 = vld [vmem:[#allocation14 + $0x10] sm:$0xff]
        %v1968 = vld [vmem:[#allocation14 + $0x18] sm:$0xff]
        %v1969 = vld [vmem:[#allocation14 + $0x20] sm:$0xff]
        %v1970 = vld [vmem:[#allocation14 + $0x28] sm:$0xff]
        %v1971 = vld [vmem:[#allocation14 + $0x30] sm:$0xff]
        %v1972 = vld [vmem:[#allocation14 + $0x38] sm:$0xff]
        %v1973 = vld [vmem:[#allocation14 + $0x40] sm:$0xff]
        %v1974 = vld [vmem:[#allocation14 + $0x48] sm:$0xff]
        %v1975 = vld [vmem:[#allocation14 + $0x50] sm:$0xff]
        %v1976 = vld [vmem:[#allocation14 + $0x58] sm:$0xff]
        %v1977 = vld [vmem:[#allocation14 + $0x60] sm:$0xff]
        %v1978 = vld [vmem:[#allocation14 + $0x68] sm:$0xff]
        %v1979 = vld [vmem:[#allocation14 + $0x70] sm:$0xff]
        %v1980 = vld [vmem:[#allocation14 + $0x78] sm:$0xff]
        %v1981 = vld [vmem:[#allocation14 + $0x80] sm:$0xff]
        %v1982 = vld [vmem:[#allocation14 + $0x88] sm:$0xff]
        %v1983 = vld [vmem:[#allocation14 + $0x90] sm:$0xff]
        %v1984 = vld [vmem:[#allocation14 + $0x98] sm:$0xff]
        %v1985 = vld [vmem:[#allocation14 + $0xa0] sm:$0xff]
        %v1986 = vld [vmem:[#allocation14 + $0xa8] sm:$0xff]
        %v1987 = vld [vmem:[#allocation14 + $0xb0] sm:$0xff]
        %v1988 = vld [vmem:[#allocation14 + $0xb8] sm:$0xff]
        %v1989 = vld [vmem:[#allocation14 + $0xc0] sm:$0xff]
        %v1990 = vld [vmem:[#allocation14 + $0xc8] sm:$0xff]
        %v1991 = vld [vmem:[#allocation14 + $0xd0] sm:$0xff]
        %v1992 = vld [vmem:[#allocation14 + $0xd8] sm:$0xff]
        %v1993 = vld [vmem:[#allocation14 + $0xe0] sm:$0xff]
        %v1994 = vld [vmem:[#allocation14 + $0xe8] sm:$0xff]
        %v1995 = vld [vmem:[#allocation14 + $0xf0] sm:$0xff]
        %v1996 = vld [vmem:[#allocation14 + $0xf8] sm:$0xff]
        %v1997 = vld [vmem:[%s18] sm:$0x1]
        %v1999 = vperm.slane %v1997, 0
        %2001 = vmatpush.msra.mxu0 %v1980
        %2002 = vmatpush.msra.mxu0 %v1979
        %2003 = vmatpush.msra.mxu0 %v1978
        %2004 = vmatpush.msra.mxu0 %v1977
        %2005 = vmatpush.msra.mxu0 %v1976
        %2006 = vmatpush.msra.mxu0 %v1975
        %2007 = vmatpush.msra.mxu0 %v1974
        %2008 = vmatpush.msra.mxu0 %v1973
        %2009 = vmatpush.msra.mxu0 %v1972
        %2010 = vmatpush.msra.mxu0 %v1971
        %2011 = vmatpush.msra.mxu0 %v1970
        %2012 = vmatpush.msra.mxu0 %v1969
        %2013 = vmatpush.msra.mxu0 %v1968
        %2014 = vmatpush.msra.mxu0 %v1967
        %2015 = vmatpush.msra.mxu0 %v1966
        %2016 = vmatpush.msra.mxu0 %v1965
        %2017 = vmatmul.f32.gmra.mxu0 %v1949
        %v2018 = vpop.f32.mrf.mxu0
        %v2019 = vadd.f32 %v1999, %v2018
        %2020 = vmatmul.f32.gmra.mxu0 %v1951
        %v2021 = vpop.f32.mrf.mxu0
        %v2022 = vadd.f32 %v1999, %v2021
        %2023 = vmatmul.f32.gmra.mxu0 %v1953
        %v2024 = vpop.f32.mrf.mxu0
        %v2025 = vadd.f32 %v1999, %v2024
        %2026 = vmatmul.f32.gmra.mxu0 %v1955
        %v2027 = vpop.f32.mrf.mxu0
        %v2028 = vadd.f32 %v1999, %v2027
        %2029 = vmatmul.f32.gmra.mxu0 %v1957
        %v2030 = vpop.f32.mrf.mxu0
        %v2031 = vadd.f32 %v1999, %v2030
        %2032 = vmatmul.f32.gmra.mxu0 %v1959
        %v2033 = vpop.f32.mrf.mxu0
        %v2034 = vadd.f32 %v1999, %v2033
        %2035 = vmatmul.f32.gmra.mxu0 %v1961
        %v2036 = vpop.f32.mrf.mxu0
        %v2037 = vadd.f32 %v1999, %v2036
        %2038 = vmatmul.f32.gmra.mxu0 %v1963
        %v2039 = vpop.f32.mrf.mxu0
        %v2040 = vadd.f32 %v1999, %v2039
        %2041 = vdwg.mxu0
        %2042 = vmatpush.msra.mxu0 %v1996
        %2043 = vmatpush.msra.mxu0 %v1995
        %2044 = vmatpush.msra.mxu0 %v1994
        %2045 = vmatpush.msra.mxu0 %v1993
        %2046 = vmatpush.msra.mxu0 %v1992
        %2047 = vmatpush.msra.mxu0 %v1991
        %2048 = vmatpush.msra.mxu0 %v1990
        %2049 = vmatpush.msra.mxu0 %v1989
        %2050 = vmatpush.msra.mxu0 %v1988
        %2051 = vmatpush.msra.mxu0 %v1987
        %2052 = vmatpush.msra.mxu0 %v1986
        %2053 = vmatpush.msra.mxu0 %v1985
        %2054 = vmatpush.msra.mxu0 %v1984
        %2055 = vmatpush.msra.mxu0 %v1983
        %2056 = vmatpush.msra.mxu0 %v1982
        %2057 = vmatpush.msra.mxu0 %v1981
        %2058 = vmatmul.f32.gmra.mxu0 %v1950
        %v2059 = vpop.f32.mrf.mxu0
        %v2060 = vadd.f32 %v2019, %v2059
        %2061 = vmatmul.f32.gmra.mxu0 %v1952
        %v2062 = vpop.f32.mrf.mxu0
        %v2063 = vadd.f32 %v2022, %v2062
        %2064 = vmatmul.f32.gmra.mxu0 %v1954
        %v2065 = vpop.f32.mrf.mxu0
        %v2066 = vadd.f32 %v2025, %v2065
        %2067 = vmatmul.f32.gmra.mxu0 %v1956
        %v2068 = vpop.f32.mrf.mxu0
        %v2069 = vadd.f32 %v2028, %v2068
        %2070 = vmatmul.f32.gmra.mxu0 %v1958
        %v2071 = vpop.f32.mrf.mxu0
        %v2072 = vadd.f32 %v2031, %v2071
        %2073 = vmatmul.f32.gmra.mxu0 %v1960
        %v2074 = vpop.f32.mrf.mxu0
        %v2075 = vadd.f32 %v2034, %v2074
        %2076 = vmatmul.f32.gmra.mxu0 %v1962
        %v2077 = vpop.f32.mrf.mxu0
        %v2078 = vadd.f32 %v2037, %v2077
        %2079 = vmatmul.f32.gmra.mxu0 %v1964
        %v2080 = vpop.f32.mrf.mxu0
        %v2081 = vadd.f32 %v2040, %v2080
        %2082 = vdwg.mxu0
        %v2083 = vadd.f32 %v1821, %v2060
        %v2084 = vadd.f32 %v1822, %v2063
        %v2085 = vadd.f32 %v1823, %v2066
        %v2086 = vadd.f32 %v1824, %v2069
        %v2087 = vadd.f32 %v1825, %v2072
        %v2088 = vadd.f32 %v1826, %v2075
        %v2089 = vadd.f32 %v1827, %v2078
        %v2090 = vadd.f32 %v1828, %v2081
        %2091 = vst [vmem:[%s703] sm:$0xff] %v2083
        %2092 = vst [vmem:[%s703 + $0x8] sm:$0xff] %v2084
        %2093 = vst [vmem:[%s703 + $0x10] sm:$0xff] %v2085
        %2094 = vst [vmem:[%s703 + $0x18] sm:$0xff] %v2086
        %2095 = vst [vmem:[%s703 + $0x20] sm:$0xff] %v2087
        %2096 = vst [vmem:[%s703 + $0x28] sm:$0xff] %v2088
        %2097 = vst [vmem:[%s703 + $0x30] sm:$0xff] %v2089
        %2098 = vst [vmem:[%s703 + $0x38] sm:$0xff] %v2090
        %s2099 = sand.u32 %s449, 1
        %s2100 = scalar_lea.sflag [#allocation5], %s2099
        %s2101 = sand.u32 %s449, 1
        %s2102 = smul.addr %s2101, 64
        %s2103 = scalar_lea.vmem [#allocation15], %s2102
        // Predicated region
        $region125: #{tpu_custom_call.1} parent=95 // pred_check
          %p2104 = pneg %p459
        $region126: #{tpu_custom_call.1} parent=95 // pred_check_branch
          %2106 = sbr.rel (%p2104) target = $region128
        $region127: #{tpu_custom_call.1} parent=95 // pred_region
          %2108 = vsyncadd %s2100, 0
          %s2109 = smul.addr %s37, 8
          %s2110 = smul.addr %s2109, 8
          %s2111 = scalar_lea.hbm %s19, %s2110
          %s2112 = sshll.u32 %s2103, 4
          %s2113 = int_to_ptr.vmem [resolvable:$true] %s2112
          %s2114 = sshll.u32 %s2111, 4
          %s2115 = int_to_ptr.hbm [resolvable:$true] %s2114
          %2120 = dma.vmem_to_hbm [thread:$0]  %s2113, 1024, %s2115, %s2100, 128, 128, 8
        $region128: #{tpu_custom_call.1} parent=95 // pred_fallthru
          _
      $region96: #{tpu_custom_call.1} parent=5 // pred_fallthru
        _
      %p2121 = scmp.le.s32.totalorder 2, %s32
      // Predicated region
      $region129: #{tpu_custom_call.1} parent=5 // pred_check
        %p2122 = pneg %p2121
      $region130: #{tpu_custom_call.1} parent=5 // pred_check_branch
        %2124 = sbr.rel (%p2122) target = $region132
      $region131: #{tpu_custom_call.1} parent=5 // pred_region
        %s2125 = ssub.s32 %s32, 2
        // Predicated region
        $region133: #{tpu_custom_call.1} parent=131 // pred_check
          %p2126 = pneg %p465
        $region134: #{tpu_custom_call.1} parent=131 // pred_check_branch
          %2128 = sbr.rel (%p2126) target = $region136
        $region135: #{tpu_custom_call.1} parent=131 // pred_region
          %s2129 = sand.u32 %s450, 1
          %s2130 = scalar_lea.sflag [#allocation5], %s2129
          %s2131 = sand.u32 %s450, 1
          %s2132 = smul.addr %s2131, 64
          %s2133 = scalar_lea.vmem [#allocation15], %s2132
          %2135 = dma.done %s2130, 1024
        $region136: #{tpu_custom_call.1} parent=131 // pred_fallthru
          _
      $region132: #{tpu_custom_call.1} parent=5 // pred_fallthru
        _
    $region6: #{tpu_custom_call.1} parent=1 // loop_footer
      %s36 = sadd.s32 1, %s32
    $region7: #{tpu_custom_call.1} parent=1 // loop_footer_branch
      %31 = sbr.rel target = $region3
    $region8: #{tpu_custom_call.1} parent=1 // loop_exit
      _
    %2136 = vsyncpa [#allocation4], 1
    %s2137 = scalar_lea.sflag [#allocation4], 1
    %2138 = vsyncpa %s2137, 1
    %2139 = vsyncpa [#allocation7], 1
    %2140 = vsyncpa [#allocation10], 1
    %2141 = vsyncpa [#allocation13], 1
    %2142 = vsyncpa [#allocation5], 1
    %s2143 = scalar_lea.sflag [#allocation5], 1
    %2144 = vsyncpa %s2143, 1

</llo_original>
